<compile_context>
chip_gen: v7x
topology: tpu7x:2x2x1
jax: 0.10.0
libtpu: 0.0.40
codegen_flags: <defaults>
</compile_context>

<pallas_src>
import jax
import jax.numpy as jnp
from jax.experimental import pallas as pl
from jax.experimental.pallas import tpu as pltpu


# ---------------------------------------------------------------------------
# In-kernel building blocks (activations are (N, C, H*W), lane dim = H*W)
# ---------------------------------------------------------------------------

def _conv1x1(x, wt):
    """1x1 conv: x (N, Cin, M) with pre-transposed weight wt (Cout, Cin) -> (N, Cout, M)."""
    n = x.shape[0]
    wb = jnp.broadcast_to(wt[None], (n,) + wt.shape)            # (N, Cout, Cin), tiny
    return jax.lax.dot_general(
        wb, x,
        dimension_numbers=(((2,), (1,)), ((0,), (0,))),
        preferred_element_type=jnp.float32)                     # (N, Cout, M)


def _upsample(x, kt):
    """Bilinear 2x upsample (align_corners=True) as one batched MXU matmul.

    x: (N, C, M), kt = kron(Ah, Aw)^T: (M, 4M)  ->  (N, C, 4M).
    """
    n = x.shape[0]
    ktb = jnp.broadcast_to(kt[None], (n,) + kt.shape)           # (N, M, 4M)
    return jax.lax.dot_general(
        x, ktb,
        dimension_numbers=(((2,), (1,)), ((0,), (0,))),
        preferred_element_type=jnp.float32)                     # (N, C, 4M)


def _relu_bn(y, g, b):
    """ReLU then train-mode BatchNorm2d (biased variance, eps=1e-5, affine)."""
    y = jnp.maximum(y, 0.0)
    n, _, m = y.shape
    inv_cnt = 1.0 / (n * m)
    s1 = jnp.sum(jnp.sum(y, axis=2, keepdims=True), axis=0, keepdims=True)      # (1,C,1)
    s2 = jnp.sum(jnp.sum(y * y, axis=2, keepdims=True), axis=0, keepdims=True)  # (1,C,1)
    mean = s1 * inv_cnt
    var = s2 * inv_cnt - mean * mean          # one-pass variance (safe post-ReLU)
    scale = jax.lax.rsqrt(var + 1e-5) * g
    return y * scale + (b - mean * scale)


def _make_decoder_kernel(n_up):
    """Kernel refs: x, [wT, gamma, beta, kronT] * n_up, final_wT, out."""
    def kernel(*refs):
        x_ref = refs[0]
        wf_ref = refs[1 + 4 * n_up]
        o_ref = refs[-1]

        x = x_ref[...]
        pending_kt = None                   # upsample deferred until after the NEXT conv
        for i in range(n_up):               # statically unrolled
            wt_ref, g_ref, b_ref, kt_ref = refs[1 + 4 * i: 5 + 4 * i]
            y = _conv1x1(x, wt_ref[...])    # conv at pre-upsample resolution (cheaper)
            if pending_kt is not None:
                y = _upsample(y, pending_kt)
            y = _relu_bn(y, g_ref[...], b_ref[...])
            pending_kt = kt_ref[...]
            x = y
        y = _conv1x1(x, wf_ref[...])
        if pending_kt is not None:
            y = _upsample(y, pending_kt)
        # numerically stable sigmoid: 0.5 * (tanh(y/2) + 1)
        o_ref[...] = 0.5 * jnp.tanh(0.5 * y) + 0.5
    return kernel


# ---------------------------------------------------------------------------
# Wrapper: parameter / interpolation-matrix plumbing (no activation transposes)
# ---------------------------------------------------------------------------

def _bilinear_matrix(n_in, n_out):
    # align_corners=True: src = o * (n_in - 1) / (n_out - 1)
    if n_in == 1:
        return jnp.ones((n_out, 1), jnp.float32)
    src = jnp.arange(n_out, dtype=jnp.float32) * (n_in - 1) / (n_out - 1)
    lo = jnp.clip(jnp.floor(src).astype(jnp.int32), 0, n_in - 2)
    frac = src - lo.astype(jnp.float32)
    rows = jnp.arange(n_out)
    A = jnp.zeros((n_out, n_in), jnp.float32)
    A = A.at[rows, lo].add(1.0 - frac)
    A = A.at[rows, lo + 1].add(frac)
    return A


def autoencodernet_forward(x_nchw, params):
    """decodetype='upsample' decoder. Input/output: NCHW float32. Single fused kernel."""
    N, C, H, W = x_nchw.shape
    layers = params["layers"]
    n_up = len(layers)

    # Hoisted interpolation matrices: kron(Ah, Aw)^T of shape (H*W, 4*H*W) per scale.
    kts = []
    h, w = H, W
    for _ in range(n_up):
        ah = _bilinear_matrix(h, 2 * h)
        aw = _bilinear_matrix(w, 2 * w)
        kts.append(jnp.kron(ah, aw).T)
        h, w = 2 * h, 2 * w
    Hout, Wout = h, w
    Cf = params["final_w"].shape[1]

    # Channel-major / spatial-last layout == flattened NCHW (pure reshape, no transpose).
    inputs = [x_nchw.reshape(N, C, H * W)]
    for (wgt, gamma, beta), kt in zip(layers, kts):
        inputs += [wgt.T,                         # (Cout, Cin), pre-transposed (tiny)
                   gamma.reshape(1, -1, 1),
                   beta.reshape(1, -1, 1),
                   kt]
    inputs.append(params["final_w"].T)            # (Cf, Cin)

    vmem_spec = pl.BlockSpec(memory_space=pltpu.MemorySpace.VMEM)
    out = pl.pallas_call(
        _make_decoder_kernel(n_up),
        out_shape=jax.ShapeDtypeStruct((N, Cf, Hout * Wout), jnp.float32),
        in_specs=[vmem_spec] * len(inputs),
        out_specs=vmem_spec,
    )(*inputs)
    return out.reshape(N, Cf, Hout, Wout)


# ---------------------------------------------------------------------------
# Pure-JAX reference for correctness checking
# ---------------------------------------------------------------------------

def reference_forward(x_nchw, params):
    x = jnp.transpose(x_nchw, (0, 2, 3, 1))                     # NHWC
    for (w, gamma, beta) in params["layers"]:
        x = jnp.einsum('nhwc,cd->nhwd', x, w)
        x = jnp.maximum(x, 0.0)
        mean = jnp.mean(x, axis=(0, 1, 2), keepdims=True)
        var = jnp.mean(jnp.square(x - mean), axis=(0, 1, 2), keepdims=True)
        x = (x - mean) * jax.lax.rsqrt(var + 1e-5) * gamma + beta
        ah = _bilinear_matrix(x.shape[1], 2 * x.shape[1])
        aw = _bilinear_matrix(x.shape[2], 2 * x.shape[2])
        x = jnp.einsum('ph,nhwc->npwc', ah, x)
        x = jnp.einsum('qw,npwc->npqc', aw, x)
    x = jnp.einsum('nhwc,cd->nhwd', x, params["final_w"])
    x = jax.nn.sigmoid(x)
    return jnp.transpose(x, (0, 3, 1, 2))


if __name__ == "__main__":
    # Module config: num_channels_up=[32,16,8], num_output_channels=4, kernel_size=1,
    # pad='reflection', upsample_mode='bilinear', need_sigmoid=True, decodetype='upsample'.
    num_channels_up = [32, 16, 8]
    num_output_channels = 4
    N, H, W = 2, 8, 8

    key = jax.random.PRNGKey(0)
    keys = jax.random.split(key, 8)

    layers = []
    for i in range(len(num_channels_up) - 1):
        cin, cout = num_channels_up[i], num_channels_up[i + 1]
        wgt = jax.random.normal(keys[i], (cin, cout), jnp.float32) * 0.1
        gamma = 1.0 + 0.1 * jax.random.normal(keys[i + 3], (cout,), jnp.float32)
        beta = 0.1 * jax.random.normal(keys[i + 5], (cout,), jnp.float32)
        layers.append((wgt, gamma, beta))
    final_w = jax.random.normal(keys[7], (num_channels_up[-1], num_output_channels),
                                jnp.float32) * 0.1
    params = {"layers": layers, "final_w": final_w}

    x = jax.random.normal(keys[2], (N, num_channels_up[0], H, W), jnp.float32)

    fwd = jax.jit(autoencodernet_forward)
    out = jax.block_until_ready(fwd(x, params))
    ref = jax.block_until_ready(reference_forward(x, params))

    assert out.shape == (N, num_output_channels, 4 * H, 4 * W), out.shape
    assert bool(jnp.all(jnp.isfinite(out)))
    err = float(jnp.max(jnp.abs(out - ref)))
    assert jnp.allclose(out, ref, atol=2e-4, rtol=2e-4), err
    print("KERNEL_OK")
</pallas_src>

<mosaic_0001>
module attributes {stable_mosaic.version = 11 : i64} {
  func.func private @main(%arg0: i32) attributes {dimension_semantics = [#tpu.dimension_semantics<core_parallel>], iteration_bounds = array<i64: 2>, tpu.core_type = #tpu.core_type<sc_scalar_subcore>, window_params = []} {
    return
  }
}

module attributes {stable_mosaic.version = 11 : i64} {
  func.func private @main(%arg0: i32) attributes {dimension_semantics = [#tpu.dimension_semantics<core_parallel>], iteration_bounds = array<i64: 2>, tpu.core_type = #tpu.core_type<sc_scalar_subcore>, window_params = []} {
    return
  }
}

module attributes {stable_mosaic.version = 11 : i64} {
  func.func @kernel(%arg0: memref<2x32x64xf32, #tpu.memory_space<vmem>>, %arg1: memref<16x32xf32, #tpu.memory_space<vmem>>, %arg2: memref<1x16x1xf32, #tpu.memory_space<vmem>>, %arg3: memref<1x16x1xf32, #tpu.memory_space<vmem>>, %arg4: memref<64x256xf32, #tpu.memory_space<vmem>>, %arg5: memref<8x16xf32, #tpu.memory_space<vmem>>, %arg6: memref<1x8x1xf32, #tpu.memory_space<vmem>>, %arg7: memref<1x8x1xf32, #tpu.memory_space<vmem>>, %arg8: memref<256x1024xf32, #tpu.memory_space<vmem>>, %arg9: memref<4x8xf32, #tpu.memory_space<vmem>>, %arg10: memref<2x4x1024xf32, #tpu.memory_space<vmem>>) attributes {dimension_semantics = [], scalar_prefetch = 0 : i64, scratch_operands = 0 : i64, tpu.core_type = #tpu.core_type<tc>} {
    %c0 = arith.constant 0 : index
    %c0_0 = arith.constant 0 : index
    %c0_1 = arith.constant 0 : index
    %0 = vector.load %arg0[%c0, %c0_0, %c0_1] : memref<2x32x64xf32, #tpu.memory_space<vmem>>, vector<2x32x64xf32>
    %c0_2 = arith.constant 0 : index
    %c0_3 = arith.constant 0 : index
    %1 = vector.load %arg1[%c0_2, %c0_3] : memref<16x32xf32, #tpu.memory_space<vmem>>, vector<16x32xf32>
    %2 = vector.shape_cast %1 : vector<16x32xf32> to vector<1x16x32xf32>
    %3 = vector.shape_cast %2 : vector<1x16x32xf32> to vector<1x16x32xf32>
    %4 = vector.broadcast %3 : vector<1x16x32xf32> to vector<2x16x32xf32>
    %cst = arith.constant dense<0.000000e+00> : vector<2x16x64xf32>
    %5 = tpu.matmul %4, %0, %cst {dimension_numbers = #tpu.dot_dimension_numbers<[2], [1], [1], [2], [0, 0, 0, 1, 1, 2], [0], [0]>} : vector<2x16x32xf32>, vector<2x32x64xf32>, vector<2x16x64xf32> -> vector<2x16x64xf32>
    %c0_4 = arith.constant 0 : index
    %c0_5 = arith.constant 0 : index
    %c0_6 = arith.constant 0 : index
    %6 = vector.load %arg2[%c0_4, %c0_5, %c0_6] : memref<1x16x1xf32, #tpu.memory_space<vmem>>, vector<1x16x1xf32>
    %c0_7 = arith.constant 0 : index
    %c0_8 = arith.constant 0 : index
    %c0_9 = arith.constant 0 : index
    %7 = vector.load %arg3[%c0_7, %c0_8, %c0_9] : memref<1x16x1xf32, #tpu.memory_space<vmem>>, vector<1x16x1xf32>
    %cst_10 = arith.constant 0.000000e+00 : f32
    %8 = vector.broadcast %cst_10 : f32 to vector<2x16x64xf32>
    %9 = arith.maximumf %5, %8 : vector<2x16x64xf32>
    %cst_11 = arith.constant dense<0.000000e+00> : vector<2x16xf32>
    %10 = vector.multi_reduction <add>, %9, %cst_11 [2] : vector<2x16x64xf32> to vector<2x16xf32>
    %11 = vector.shape_cast %10 : vector<2x16xf32> to vector<2x16x1xf32>
    %cst_12 = arith.constant dense<0.000000e+00> : vector<16x1xf32>
    %12 = vector.multi_reduction <add>, %11, %cst_12 [0] : vector<2x16x1xf32> to vector<16x1xf32>
    %13 = vector.shape_cast %12 : vector<16x1xf32> to vector<1x16x1xf32>
    %14 = arith.mulf %9, %9 : vector<2x16x64xf32>
    %cst_13 = arith.constant dense<0.000000e+00> : vector<2x16xf32>
    %15 = vector.multi_reduction <add>, %14, %cst_13 [2] : vector<2x16x64xf32> to vector<2x16xf32>
    %16 = vector.shape_cast %15 : vector<2x16xf32> to vector<2x16x1xf32>
    %cst_14 = arith.constant dense<0.000000e+00> : vector<16x1xf32>
    %17 = vector.multi_reduction <add>, %16, %cst_14 [0] : vector<2x16x1xf32> to vector<16x1xf32>
    %18 = vector.shape_cast %17 : vector<16x1xf32> to vector<1x16x1xf32>
    %cst_15 = arith.constant 7.812500e-03 : f32
    %19 = vector.broadcast %cst_15 : f32 to vector<1x16x1xf32>
    %20 = arith.mulf %13, %19 : vector<1x16x1xf32>
    %cst_16 = arith.constant 7.812500e-03 : f32
    %21 = vector.broadcast %cst_16 : f32 to vector<1x16x1xf32>
    %22 = arith.mulf %18, %21 : vector<1x16x1xf32>
    %23 = arith.mulf %20, %20 : vector<1x16x1xf32>
    %24 = arith.subf %22, %23 : vector<1x16x1xf32>
    %cst_17 = arith.constant 9.99999974E-6 : f32
    %25 = vector.broadcast %cst_17 : f32 to vector<1x16x1xf32>
    %26 = arith.addf %24, %25 : vector<1x16x1xf32>
    %27 = math.rsqrt %26 : vector<1x16x1xf32>
    %28 = arith.mulf %27, %6 : vector<1x16x1xf32>
    %29 = vector.broadcast %28 : vector<1x16x1xf32> to vector<2x16x64xf32>
    %30 = arith.mulf %9, %29 : vector<2x16x64xf32>
    %31 = arith.mulf %20, %28 : vector<1x16x1xf32>
    %32 = arith.subf %7, %31 : vector<1x16x1xf32>
    %33 = vector.broadcast %32 : vector<1x16x1xf32> to vector<2x16x64xf32>
    %34 = arith.addf %30, %33 : vector<2x16x64xf32>
    %c0_18 = arith.constant 0 : index
    %c0_19 = arith.constant 0 : index
    %35 = vector.load %arg4[%c0_18, %c0_19] : memref<64x256xf32, #tpu.memory_space<vmem>>, vector<64x256xf32>
    %c0_20 = arith.constant 0 : index
    %c0_21 = arith.constant 0 : index
    %36 = vector.load %arg5[%c0_20, %c0_21] : memref<8x16xf32, #tpu.memory_space<vmem>>, vector<8x16xf32>
    %37 = vector.shape_cast %36 : vector<8x16xf32> to vector<1x8x16xf32>
    %38 = vector.shape_cast %37 : vector<1x8x16xf32> to vector<1x8x16xf32>
    %39 = vector.broadcast %38 : vector<1x8x16xf32> to vector<2x8x16xf32>
    %cst_22 = arith.constant dense<0.000000e+00> : vector<2x8x64xf32>
    %40 = tpu.matmul %39, %34, %cst_22 {dimension_numbers = #tpu.dot_dimension_numbers<[2], [1], [1], [2], [0, 0, 0, 1, 1, 2], [0], [0]>} : vector<2x8x16xf32>, vector<2x16x64xf32>, vector<2x8x64xf32> -> vector<2x8x64xf32>
    %41 = vector.shape_cast %35 : vector<64x256xf32> to vector<1x64x256xf32>
    %42 = vector.shape_cast %41 : vector<1x64x256xf32> to vector<1x64x256xf32>
    %43 = vector.broadcast %42 : vector<1x64x256xf32> to vector<2x64x256xf32>
    %cst_23 = arith.constant dense<0.000000e+00> : vector<2x8x256xf32>
    %44 = tpu.matmul %40, %43, %cst_23 {dimension_numbers = #tpu.dot_dimension_numbers<[2], [1], [1], [2], [0, 0, 0, 1, 1, 2], [0], [0]>} : vector<2x8x64xf32>, vector<2x64x256xf32>, vector<2x8x256xf32> -> vector<2x8x256xf32>
    %c0_24 = arith.constant 0 : index
    %c0_25 = arith.constant 0 : index
    %c0_26 = arith.constant 0 : index
    %45 = vector.load %arg6[%c0_24, %c0_25, %c0_26] : memref<1x8x1xf32, #tpu.memory_space<vmem>>, vector<1x8x1xf32>
    %c0_27 = arith.constant 0 : index
    %c0_28 = arith.constant 0 : index
    %c0_29 = arith.constant 0 : index
    %46 = vector.load %arg7[%c0_27, %c0_28, %c0_29] : memref<1x8x1xf32, #tpu.memory_space<vmem>>, vector<1x8x1xf32>
    %cst_30 = arith.constant 0.000000e+00 : f32
    %47 = vector.broadcast %cst_30 : f32 to vector<2x8x256xf32>
    %48 = arith.maximumf %44, %47 : vector<2x8x256xf32>
    %cst_31 = arith.constant dense<0.000000e+00> : vector<2x8xf32>
    %49 = vector.multi_reduction <add>, %48, %cst_31 [2] : vector<2x8x256xf32> to vector<2x8xf32>
    %50 = vector.shape_cast %49 : vector<2x8xf32> to vector<2x8x1xf32>
    %cst_32 = arith.constant dense<0.000000e+00> : vector<8x1xf32>
    %51 = vector.multi_reduction <add>, %50, %cst_32 [0] : vector<2x8x1xf32> to vector<8x1xf32>
    %52 = vector.shape_cast %51 : vector<8x1xf32> to vector<1x8x1xf32>
    %53 = arith.mulf %48, %48 : vector<2x8x256xf32>
    %cst_33 = arith.constant dense<0.000000e+00> : vector<2x8xf32>
    %54 = vector.multi_reduction <add>, %53, %cst_33 [2] : vector<2x8x256xf32> to vector<2x8xf32>
    %55 = vector.shape_cast %54 : vector<2x8xf32> to vector<2x8x1xf32>
    %cst_34 = arith.constant dense<0.000000e+00> : vector<8x1xf32>
    %56 = vector.multi_reduction <add>, %55, %cst_34 [0] : vector<2x8x1xf32> to vector<8x1xf32>
    %57 = vector.shape_cast %56 : vector<8x1xf32> to vector<1x8x1xf32>
    %cst_35 = arith.constant 0.001953125 : f32
    %58 = vector.broadcast %cst_35 : f32 to vector<1x8x1xf32>
    %59 = arith.mulf %52, %58 : vector<1x8x1xf32>
    %cst_36 = arith.constant 0.001953125 : f32
    %60 = vector.broadcast %cst_36 : f32 to vector<1x8x1xf32>
    %61 = arith.mulf %57, %60 : vector<1x8x1xf32>
    %62 = arith.mulf %59, %59 : vector<1x8x1xf32>
    %63 = arith.subf %61, %62 : vector<1x8x1xf32>
    %cst_37 = arith.constant 9.99999974E-6 : f32
    %64 = vector.broadcast %cst_37 : f32 to vector<1x8x1xf32>
    %65 = arith.addf %63, %64 : vector<1x8x1xf32>
    %66 = math.rsqrt %65 : vector<1x8x1xf32>
    %67 = arith.mulf %66, %45 : vector<1x8x1xf32>
    %68 = vector.broadcast %67 : vector<1x8x1xf32> to vector<2x8x256xf32>
    %69 = arith.mulf %48, %68 : vector<2x8x256xf32>
    %70 = arith.mulf %59, %67 : vector<1x8x1xf32>
    %71 = arith.subf %46, %70 : vector<1x8x1xf32>
    %72 = vector.broadcast %71 : vector<1x8x1xf32> to vector<2x8x256xf32>
    %73 = arith.addf %69, %72 : vector<2x8x256xf32>
    %c0_38 = arith.constant 0 : index
    %c0_39 = arith.constant 0 : index
    %74 = vector.load %arg8[%c0_38, %c0_39] : memref<256x1024xf32, #tpu.memory_space<vmem>>, vector<256x1024xf32>
    %c0_40 = arith.constant 0 : index
    %c0_41 = arith.constant 0 : index
    %75 = vector.load %arg9[%c0_40, %c0_41] : memref<4x8xf32, #tpu.memory_space<vmem>>, vector<4x8xf32>
    %76 = vector.shape_cast %75 : vector<4x8xf32> to vector<1x4x8xf32>
    %77 = vector.shape_cast %76 : vector<1x4x8xf32> to vector<1x4x8xf32>
    %78 = vector.broadcast %77 : vector<1x4x8xf32> to vector<2x4x8xf32>
    %cst_42 = arith.constant dense<0.000000e+00> : vector<2x4x256xf32>
    %79 = tpu.matmul %78, %73, %cst_42 {dimension_numbers = #tpu.dot_dimension_numbers<[2], [1], [1], [2], [0, 0, 0, 1, 1, 2], [0], [0]>} : vector<2x4x8xf32>, vector<2x8x256xf32>, vector<2x4x256xf32> -> vector<2x4x256xf32>
    %80 = vector.shape_cast %74 : vector<256x1024xf32> to vector<1x256x1024xf32>
    %81 = vector.shape_cast %80 : vector<1x256x1024xf32> to vector<1x256x1024xf32>
    %82 = vector.broadcast %81 : vector<1x256x1024xf32> to vector<2x256x1024xf32>
    %cst_43 = arith.constant dense<0.000000e+00> : vector<2x4x1024xf32>
    %83 = tpu.matmul %79, %82, %cst_43 {dimension_numbers = #tpu.dot_dimension_numbers<[2], [1], [1], [2], [0, 0, 0, 1, 1, 2], [0], [0]>} : vector<2x4x256xf32>, vector<2x256x1024xf32>, vector<2x4x1024xf32> -> vector<2x4x1024xf32>
    %cst_44 = arith.constant 5.000000e-01 : f32
    %84 = vector.broadcast %cst_44 : f32 to vector<2x4x1024xf32>
    %85 = arith.mulf %84, %83 : vector<2x4x1024xf32>
    %86 = math.tanh %85 : vector<2x4x1024xf32>
    %cst_45 = arith.constant 5.000000e-01 : f32
    %87 = vector.broadcast %cst_45 : f32 to vector<2x4x1024xf32>
    %88 = arith.mulf %87, %86 : vector<2x4x1024xf32>
    %cst_46 = arith.constant 5.000000e-01 : f32
    %89 = vector.broadcast %cst_46 : f32 to vector<2x4x1024xf32>
    %90 = arith.addf %88, %89 : vector<2x4x1024xf32>
    %c0_47 = arith.constant 0 : index
    %c0_48 = arith.constant 0 : index
    %c0_49 = arith.constant 0 : index
    %91 = vector.load %arg10[%c0_47, %c0_48, %c0_49] : memref<2x4x1024xf32, #tpu.memory_space<vmem>>, vector<2x4x1024xf32>
    tpu.vector_store %arg10[%c0_47, %c0_48, %c0_49], %90 {strides = array<i32>} : memref<2x4x1024xf32, #tpu.memory_space<vmem>>, vector<2x4x1024xf32>,
    return
  }
}

</mosaic_0001>

<llo_original>
// kernel: autoencodernet_forward.1
$region0: #{autoencodernet_forward.1}
  #allocation0 [shape = 'u32[]', space=smem, size = 0x4, offset = 0x4, fixed_abs, tag = 'smem constant byte address 0x4 - core index']
  #allocation1 [shape = 'u32[144,128]{1,0:T(1,128)}', space=vmem, size = 0x12000, scoped, tag = 'internal scratch']
  %s0 = inlined_call_operand.vmem [shape: f32[2,32,64], index: 0, kind: input, shape index: {}]
  %s1 = inlined_call_operand.vmem [shape: f32[16,32], index: 1, kind: input, shape index: {}]
  %s2 = inlined_call_operand.vmem [shape: f32[1,16,1], index: 2, kind: input, shape index: {}]
  %s3 = inlined_call_operand.vmem [shape: f32[1,16,1], index: 3, kind: input, shape index: {}]
  %s4 = inlined_call_operand.vmem [shape: f32[64,256], index: 4, kind: input, shape index: {}]
  %s5 = inlined_call_operand.vmem [shape: f32[8,16], index: 5, kind: input, shape index: {}]
  %s6 = inlined_call_operand.vmem [shape: f32[1,8,1], index: 6, kind: input, shape index: {}]
  %s7 = inlined_call_operand.vmem [shape: f32[1,8,1], index: 7, kind: input, shape index: {}]
  %s8 = inlined_call_operand.vmem [shape: f32[256,1024], index: 8, kind: input, shape index: {}]
  %s9 = inlined_call_operand.vmem [shape: f32[4,8], index: 9, kind: input, shape index: {}]
  %s10 = inlined_call_operand.vmem [shape: f32[2,4,1024], index: 10, kind: output, shape index: {}]
  %s11 = sld [smem:[#allocation0]]
  $region50: #{autoencodernet_forward.1} parent=0
    _
  %s13 = ssub.s32 1, %s11
  %s14 = scalar_select 0, %s13, %s11
  // Predicated region
  $region2: #{autoencodernet_forward.1} parent=0 // pred_check
    _
  $region3: #{autoencodernet_forward.1} parent=0 // pred_check_branch
    %16 = sbr.rel (0) target = $region5
  $region4: #{autoencodernet_forward.1} parent=0 // pred_region
    _
  $region5: #{autoencodernet_forward.1} parent=0 // pred_fallthru
    _
  // Predicated region
  $region6: #{autoencodernet_forward.1} parent=0 // pred_check
    _
  $region7: #{autoencodernet_forward.1} parent=0 // pred_check_branch
    %18 = sbr.rel (0) target = $region9
  $region8: #{autoencodernet_forward.1} parent=0 // pred_region
    _
  $region9: #{autoencodernet_forward.1} parent=0 // pred_fallthru
    _
  // Predicated region
  $region10: #{autoencodernet_forward.1} parent=0 // pred_check
    _
  $region11: #{autoencodernet_forward.1} parent=0 // pred_check_branch
    %20 = sbr.rel (0) target = $region13
  $region12: #{autoencodernet_forward.1} parent=0 // pred_region
    _
  $region13: #{autoencodernet_forward.1} parent=0 // pred_fallthru
    _
  // Predicated region
  $region14: #{autoencodernet_forward.1} parent=0 // pred_check
    _
  $region15: #{autoencodernet_forward.1} parent=0 // pred_check_branch
    %22 = sbr.rel (0) target = $region17
  $region16: #{autoencodernet_forward.1} parent=0 // pred_region
    _
  $region17: #{autoencodernet_forward.1} parent=0 // pred_fallthru
    _
  // Predicated region
  $region18: #{autoencodernet_forward.1} parent=0 // pred_check
    _
  $region19: #{autoencodernet_forward.1} parent=0 // pred_check_branch
    %24 = sbr.rel (0) target = $region21
  $region20: #{autoencodernet_forward.1} parent=0 // pred_region
    _
  $region21: #{autoencodernet_forward.1} parent=0 // pred_fallthru
    _
  // Predicated region
  $region22: #{autoencodernet_forward.1} parent=0 // pred_check
    _
  $region23: #{autoencodernet_forward.1} parent=0 // pred_check_branch
    %26 = sbr.rel (0) target = $region25
  $region24: #{autoencodernet_forward.1} parent=0 // pred_region
    _
  $region25: #{autoencodernet_forward.1} parent=0 // pred_fallthru
    _
  // Predicated region
  $region26: #{autoencodernet_forward.1} parent=0 // pred_check
    _
  $region27: #{autoencodernet_forward.1} parent=0 // pred_check_branch
    %28 = sbr.rel (0) target = $region29
  $region28: #{autoencodernet_forward.1} parent=0 // pred_region
    _
  $region29: #{autoencodernet_forward.1} parent=0 // pred_fallthru
    _
  // Predicated region
  $region30: #{autoencodernet_forward.1} parent=0 // pred_check
    _
  $region31: #{autoencodernet_forward.1} parent=0 // pred_check_branch
    %30 = sbr.rel (0) target = $region33
  $region32: #{autoencodernet_forward.1} parent=0 // pred_region
    _
  $region33: #{autoencodernet_forward.1} parent=0 // pred_fallthru
    _
  // Predicated region
  $region34: #{autoencodernet_forward.1} parent=0 // pred_check
    _
  $region35: #{autoencodernet_forward.1} parent=0 // pred_check_branch
    %32 = sbr.rel (0) target = $region37
  $region36: #{autoencodernet_forward.1} parent=0 // pred_region
    _
  $region37: #{autoencodernet_forward.1} parent=0 // pred_fallthru
    _
  // Predicated region
  $region38: #{autoencodernet_forward.1} parent=0 // pred_check
    _
  $region39: #{autoencodernet_forward.1} parent=0 // pred_check_branch
    %34 = sbr.rel (0) target = $region41
  $region40: #{autoencodernet_forward.1} parent=0 // pred_region
    _
  $region41: #{autoencodernet_forward.1} parent=0 // pred_fallthru
    _
  %v35 = vld [vmem:[%s0] sm:$0xff]
  %v36 = vld [vmem:[%s0 + $0x8] sm:$0xff]
  %v37 = vld [vmem:[%s0 + $0x10] sm:$0xff]
  %v38 = vld [vmem:[%s0 + $0x18] sm:$0xff]
  %v39 = vld [vmem:[%s0 + $0x20] sm:$0xff]
  %v40 = vld [vmem:[%s0 + $0x28] sm:$0xff]
  %v41 = vld [vmem:[%s0 + $0x30] sm:$0xff]
  %v42 = vld [vmem:[%s0 + $0x38] sm:$0xff]
  %v43 = vld [vmem:[%s1] sm:$0xff]
  %v44 = vld [vmem:[%s1 + $0x8] sm:$0xff]
  %vm45 = vcmask 261120
  %v47 = vsel %vm45, %v43, 0
  %v50 = vsel %vm45, %v44, 0
  %52 = vmatprep.subr.mxu0 0.0
  %53 = vmatpush1.msra.mxu0 %v35
  %54 = vmatprep.subr.mxu0 0.0
  %55 = vmatpush1.msra.mxu0 %v36
  %56 = vmatprep.subr.mxu0 0.0
  %57 = vmatpush1.msra.mxu0 %v37
  %58 = vmatprep.subr.mxu0 0.0
  %59 = vmatpush1.msra.mxu0 %v38
  %60 = vmatprep.subr.mxu0 0.0
  %61 = vmatpush1.msra.mxu0 0.0
  %62 = vmatprep.subr.mxu0 0.0
  %63 = vmatpush1.msra.mxu0 0.0
  %64 = vmatprep.subr.mxu0 0.0
  %65 = vmatpush1.msra.mxu0 0.0
  %66 = vmatprep.subr.mxu0 0.0
  %67 = vmatpush1.msra.mxu0 0.0
  %68 = vmatprep.subr.mxu0 0.0
  %69 = vmatpush1.msra.mxu0 0.0
  %70 = vmatprep.subr.mxu0 0.0
  %71 = vmatpush1.msra.mxu0 0.0
  %72 = vmatprep.subr.mxu0 0.0
  %73 = vmatpush1.msra.mxu0 0.0
  %74 = vmatprep.subr.mxu0 0.0
  %75 = vmatpush1.msra.mxu0 0.0
  %76 = vmatprep.subr.mxu0 0.0
  %77 = vmatpush1.msra.mxu0 0.0
  %78 = vmatprep.subr.mxu0 0.0
  %79 = vmatpush1.msra.mxu0 0.0
  %80 = vmatprep.subr.mxu0 0.0
  %81 = vmatpush1.msra.mxu0 0.0
  %82 = vmatprep.subr.mxu0 0.0
  %83 = vmatpush1.msra.mxu0 0.0
  %84 = vmatprep.subr.mxu0 0.0
  %85 = vmatpush1.msra.mxu0 0.0
  %86 = vmatprep.subr.mxu0 0.0
  %87 = vmatpush1.msra.mxu0 0.0
  %88 = vmatprep.subr.mxu0 0.0
  %89 = vmatpush1.msra.mxu0 0.0
  %90 = vmatprep.subr.mxu0 0.0
  %91 = vmatpush1.msra.mxu0 0.0
  %92 = vmatprep.subr.mxu0 0.0
  %93 = vmatpush1.msra.mxu0 0.0
  %94 = vmatprep.subr.mxu0 0.0
  %95 = vmatpush1.msra.mxu0 0.0
  %96 = vmatprep.subr.mxu0 0.0
  %97 = vmatpush1.msra.mxu0 0.0
  %98 = vmatprep.subr.mxu0 0.0
  %99 = vmatpush1.msra.mxu0 0.0
  %100 = vmatprep.subr.mxu0 0.0
  %101 = vmatpush1.msra.mxu0 0.0
  %102 = vmatprep.subr.mxu0 0.0
  %103 = vmatpush1.msra.mxu0 0.0
  %104 = vmatprep.subr.mxu0 0.0
  %105 = vmatpush1.msra.mxu0 0.0
  %106 = vmatprep.subr.mxu0 0.0
  %107 = vmatpush1.msra.mxu0 0.0
  %108 = vmatprep.subr.mxu0 0.0
  %109 = vmatpush1.msra.mxu0 0.0
  %110 = vmatprep.subr.mxu0 0.0
  %111 = vmatpush1.msra.mxu0 0.0
  %112 = vmatprep.subr.mxu0 0.0
  %113 = vmatpush1.msra.mxu0 0.0
  %114 = vmatprep.subr.mxu0 0.0
  %115 = vmatpush1.msra.mxu0 0.0
  %116 = vmatprep.mubr.f32.mxu0 0.0
  %117 = vmatmul.mubr.f32.gmra.mrb[0].mxu0 %v47
  %v118 = vpop.f32.mrb[0].mxu0
  %v119 = vadd.f32 0.0, %v118
  %v120 = vpop.f32.mrb[0].mxu0
  %121 = vmatprep.mubr.f32.mxu0 0.0
  %122 = vmatmul.mubr.f32.gmra.mrb[0].mxu0 %v50
  %v123 = vpop.f32.mrb[0].mxu0
  %v124 = vadd.f32 0.0, %v123
  %v125 = vpop.f32.mrb[0].mxu0
  %126 = vdwg.mxu0
  %127 = vmatprep.subr.mxu0 0.0
  %128 = vmatpush1.msra.mxu0 %v39
  %129 = vmatprep.subr.mxu0 0.0
  %130 = vmatpush1.msra.mxu0 %v40
  %131 = vmatprep.subr.mxu0 0.0
  %132 = vmatpush1.msra.mxu0 %v41
  %133 = vmatprep.subr.mxu0 0.0
  %134 = vmatpush1.msra.mxu0 %v42
  %135 = vmatprep.subr.mxu0 0.0
  %136 = vmatpush1.msra.mxu0 0.0
  %137 = vmatprep.subr.mxu0 0.0
  %138 = vmatpush1.msra.mxu0 0.0
  %139 = vmatprep.subr.mxu0 0.0
  %140 = vmatpush1.msra.mxu0 0.0
  %141 = vmatprep.subr.mxu0 0.0
  %142 = vmatpush1.msra.mxu0 0.0
  %143 = vmatprep.subr.mxu0 0.0
  %144 = vmatpush1.msra.mxu0 0.0
  %145 = vmatprep.subr.mxu0 0.0
  %146 = vmatpush1.msra.mxu0 0.0
  %147 = vmatprep.subr.mxu0 0.0
  %148 = vmatpush1.msra.mxu0 0.0
  %149 = vmatprep.subr.mxu0 0.0
  %150 = vmatpush1.msra.mxu0 0.0
  %151 = vmatprep.subr.mxu0 0.0
  %152 = vmatpush1.msra.mxu0 0.0
  %153 = vmatprep.subr.mxu0 0.0
  %154 = vmatpush1.msra.mxu0 0.0
  %155 = vmatprep.subr.mxu0 0.0
  %156 = vmatpush1.msra.mxu0 0.0
  %157 = vmatprep.subr.mxu0 0.0
  %158 = vmatpush1.msra.mxu0 0.0
  %159 = vmatprep.subr.mxu0 0.0
  %160 = vmatpush1.msra.mxu0 0.0
  %161 = vmatprep.subr.mxu0 0.0
  %162 = vmatpush1.msra.mxu0 0.0
  %163 = vmatprep.subr.mxu0 0.0
  %164 = vmatpush1.msra.mxu0 0.0
  %165 = vmatprep.subr.mxu0 0.0
  %166 = vmatpush1.msra.mxu0 0.0
  %167 = vmatprep.subr.mxu0 0.0
  %168 = vmatpush1.msra.mxu0 0.0
  %169 = vmatprep.subr.mxu0 0.0
  %170 = vmatpush1.msra.mxu0 0.0
  %171 = vmatprep.subr.mxu0 0.0
  %172 = vmatpush1.msra.mxu0 0.0
  %173 = vmatprep.subr.mxu0 0.0
  %174 = vmatpush1.msra.mxu0 0.0
  %175 = vmatprep.subr.mxu0 0.0
  %176 = vmatpush1.msra.mxu0 0.0
  %177 = vmatprep.subr.mxu0 0.0
  %178 = vmatpush1.msra.mxu0 0.0
  %179 = vmatprep.subr.mxu0 0.0
  %180 = vmatpush1.msra.mxu0 0.0
  %181 = vmatprep.subr.mxu0 0.0
  %182 = vmatpush1.msra.mxu0 0.0
  %183 = vmatprep.subr.mxu0 0.0
  %184 = vmatpush1.msra.mxu0 0.0
  %185 = vmatprep.subr.mxu0 0.0
  %186 = vmatpush1.msra.mxu0 0.0
  %187 = vmatprep.subr.mxu0 0.0
  %188 = vmatpush1.msra.mxu0 0.0
  %189 = vmatprep.subr.mxu0 0.0
  %190 = vmatpush1.msra.mxu0 0.0
  %191 = vmatprep.mubr.f32.mxu0 0.0
  %192 = vmatmul.mubr.f32.gmra.mrb[0].mxu0 %v47
  %v193 = vpop.f32.mrb[0].mxu0
  %v194 = vadd.f32 0.0, %v193
  %v195 = vpop.f32.mrb[0].mxu0
  %196 = vmatprep.mubr.f32.mxu0 0.0
  %197 = vmatmul.mubr.f32.gmra.mrb[0].mxu0 %v50
  %v198 = vpop.f32.mrb[0].mxu0
  %v199 = vadd.f32 0.0, %v198
  %v200 = vpop.f32.mrb[0].mxu0
  %201 = vdwg.mxu0
  %v202 = vld [vmem:[%s2] sm:$0xff]
  %v203 = vld [vmem:[%s2 + $0x8] sm:$0xff]
  %v204 = vld [vmem:[%s3] sm:$0xff]
  %v205 = vld [vmem:[%s3 + $0x8] sm:$0xff]
  %v206 = vmax.f32 %v119, 0.0
  %v207 = vmax.f32 %v124, 0.0
  %v208 = vmax.f32 %v194, 0.0
  %v209 = vmax.f32 %v199, 0.0
  %vm210 = vcmask 523264
  %v211 = vsel %vm210, %v206, 0.0
  %212 = vadd.xlane.f32.xlu0 %v211
  %v213 = vpop.xlane.xlu0 %212
  %v214 = vsel %vm210, %v207, 0.0
  %215 = vadd.xlane.f32.xlu0 %v214
  %v216 = vpop.xlane.xlu0 %215
  %v217 = vsel %vm210, %v208, 0.0
  %218 = vadd.xlane.f32.xlu0 %v217
  %v219 = vpop.xlane.xlu0 %218
  %v220 = vsel %vm210, %v209, 0.0
  %221 = vadd.xlane.f32.xlu0 %v220
  %v222 = vpop.xlane.xlu0 %221
  %v223 = vadd.f32 %v213, %v219
  %v224 = vadd.f32 %v216, %v222
  %v225 = vmul.f32 %v206, %v206
  %v226 = vmul.f32 %v207, %v207
  %v227 = vmul.f32 %v208, %v208
  %v228 = vmul.f32 %v209, %v209
  %v229 = vsel %vm210, %v225, 0.0
  %230 = vadd.xlane.f32.xlu0 %v229
  %v231 = vpop.xlane.xlu0 %230
  %v232 = vsel %vm210, %v226, 0.0
  %233 = vadd.xlane.f32.xlu0 %v232
  %v234 = vpop.xlane.xlu0 %233
  %v235 = vsel %vm210, %v227, 0.0
  %236 = vadd.xlane.f32.xlu0 %v235
  %v237 = vpop.xlane.xlu0 %236
  %v238 = vsel %vm210, %v228, 0.0
  %239 = vadd.xlane.f32.xlu0 %v238
  %v240 = vpop.xlane.xlu0 %239
  %v241 = vadd.f32 %v231, %v237
  %v242 = vadd.f32 %v234, %v240
  %v243 = vmul.f32 %v223, 0.0078125
  %v244 = vmul.f32 %v224, 0.0078125
  %v245 = vmul.f32 %v241, 0.0078125
  %v246 = vmul.f32 %v242, 0.0078125
  %v247 = vmul.f32 %v243, %v243
  %v248 = vmul.f32 %v244, %v244
  %v249 = vsub.f32 %v245, %v247
  %v250 = vsub.f32 %v246, %v248
  %v251 = vadd.f32 %v249, 1e-05
  %v252 = vadd.f32 %v250, 1e-05
  %v253 = vrsqrt.pop %v251
  %v254 = vrsqrt.pop %v252
  %v255 = vmul.f32 %v253, %v202
  %v256 = vmul.f32 %v254, %v203
  %258 = vset.pattern.permute.xlu0 0
  %259 = vperm.xlu0 %258, %v255
  %v260 = vpop.permute.xlu0 %259
  %263 = vset.pattern.permute.xlu0 0
  %264 = vperm.xlu0 %263, %v256
  %v265 = vpop.permute.xlu0 %264
  %v267 = vmul.f32 %v206, %v260
  %v268 = vmul.f32 %v207, %v265
  %v269 = vmul.f32 %v208, %v260
  %v270 = vmul.f32 %v209, %v265
  %v271 = vmul.f32 %v243, %v255
  %v272 = vmul.f32 %v244, %v256
  %v273 = vsub.f32 %v204, %v271
  %v274 = vsub.f32 %v205, %v272
  %276 = vset.pattern.permute.xlu0 0
  %277 = vperm.xlu0 %276, %v273
  %v278 = vpop.permute.xlu0 %277
  %281 = vset.pattern.permute.xlu0 0
  %282 = vperm.xlu0 %281, %v274
  %v283 = vpop.permute.xlu0 %282
  %v285 = vadd.f32 %v267, %v278
  %v286 = vadd.f32 %v268, %v283
  %v287 = vadd.f32 %v269, %v278
  %v288 = vadd.f32 %v270, %v283
  %v289 = vld [vmem:[%s4] sm:$0xff]
  %v290 = vld [vmem:[%s4 + $0x8] sm:$0xff]
  %v291 = vld [vmem:[%s4 + $0x10] sm:$0xff]
  %v292 = vld [vmem:[%s4 + $0x18] sm:$0xff]
  %v293 = vld [vmem:[%s4 + $0x20] sm:$0xff]
  %v294 = vld [vmem:[%s4 + $0x28] sm:$0xff]
  %v295 = vld [vmem:[%s4 + $0x30] sm:$0xff]
  %v296 = vld [vmem:[%s4 + $0x38] sm:$0xff]
  %v297 = vld [vmem:[%s4 + $0x40] sm:$0xff]
  %v298 = vld [vmem:[%s4 + $0x48] sm:$0xff]
  %v299 = vld [vmem:[%s4 + $0x50] sm:$0xff]
  %v300 = vld [vmem:[%s4 + $0x58] sm:$0xff]
  %v301 = vld [vmem:[%s4 + $0x60] sm:$0xff]
  %v302 = vld [vmem:[%s4 + $0x68] sm:$0xff]
  %v303 = vld [vmem:[%s4 + $0x70] sm:$0xff]
  %v304 = vld [vmem:[%s4 + $0x78] sm:$0xff]
  %v305 = vld [vmem:[%s5] sm:$0xff]
  %vm306 = vcmask 130048
  %v308 = vsel %vm306, %v305, 0
  %310 = vmatprep.subr.mxu0 0.0
  %311 = vmatpush1.msra.mxu0 %v285
  %312 = vmatprep.subr.mxu0 0.0
  %313 = vmatpush1.msra.mxu0 %v286
  %314 = vmatprep.subr.mxu0 0.0
  %315 = vmatpush1.msra.mxu0 0.0
  %316 = vmatprep.subr.mxu0 0.0
  %317 = vmatpush1.msra.mxu0 0.0
  %318 = vmatprep.subr.mxu0 0.0
  %319 = vmatpush1.msra.mxu0 0.0
  %320 = vmatprep.subr.mxu0 0.0
  %321 = vmatpush1.msra.mxu0 0.0
  %322 = vmatprep.subr.mxu0 0.0
  %323 = vmatpush1.msra.mxu0 0.0
  %324 = vmatprep.subr.mxu0 0.0
  %325 = vmatpush1.msra.mxu0 0.0
  %326 = vmatprep.subr.mxu0 0.0
  %327 = vmatpush1.msra.mxu0 0.0
  %328 = vmatprep.subr.mxu0 0.0
  %329 = vmatpush1.msra.mxu0 0.0
  %330 = vmatprep.subr.mxu0 0.0
  %331 = vmatpush1.msra.mxu0 0.0
  %332 = vmatprep.subr.mxu0 0.0
  %333 = vmatpush1.msra.mxu0 0.0
  %334 = vmatprep.subr.mxu0 0.0
  %335 = vmatpush1.msra.mxu0 0.0
  %336 = vmatprep.subr.mxu0 0.0
  %337 = vmatpush1.msra.mxu0 0.0
  %338 = vmatprep.subr.mxu0 0.0
  %339 = vmatpush1.msra.mxu0 0.0
  %340 = vmatprep.subr.mxu0 0.0
  %341 = vmatpush1.msra.mxu0 0.0
  %342 = vmatprep.subr.mxu0 0.0
  %343 = vmatpush1.msra.mxu0 0.0
  %344 = vmatprep.subr.mxu0 0.0
  %345 = vmatpush1.msra.mxu0 0.0
  %346 = vmatprep.subr.mxu0 0.0
  %347 = vmatpush1.msra.mxu0 0.0
  %348 = vmatprep.subr.mxu0 0.0
  %349 = vmatpush1.msra.mxu0 0.0
  %350 = vmatprep.subr.mxu0 0.0
  %351 = vmatpush1.msra.mxu0 0.0
  %352 = vmatprep.subr.mxu0 0.0
  %353 = vmatpush1.msra.mxu0 0.0
  %354 = vmatprep.subr.mxu0 0.0
  %355 = vmatpush1.msra.mxu0 0.0
  %356 = vmatprep.subr.mxu0 0.0
  %357 = vmatpush1.msra.mxu0 0.0
  %358 = vmatprep.subr.mxu0 0.0
  %359 = vmatpush1.msra.mxu0 0.0
  %360 = vmatprep.subr.mxu0 0.0
  %361 = vmatpush1.msra.mxu0 0.0
  %362 = vmatprep.subr.mxu0 0.0
  %363 = vmatpush1.msra.mxu0 0.0
  %364 = vmatprep.subr.mxu0 0.0
  %365 = vmatpush1.msra.mxu0 0.0
  %366 = vmatprep.subr.mxu0 0.0
  %367 = vmatpush1.msra.mxu0 0.0
  %368 = vmatprep.subr.mxu0 0.0
  %369 = vmatpush1.msra.mxu0 0.0
  %370 = vmatprep.subr.mxu0 0.0
  %371 = vmatpush1.msra.mxu0 0.0
  %372 = vmatprep.subr.mxu0 0.0
  %373 = vmatpush1.msra.mxu0 0.0
  %374 = vmatprep.mubr.f32.mxu0 0.0
  %375 = vmatmul.mubr.f32.gmra.mrb[0].mxu0 %v308
  %v376 = vpop.f32.mrb[0].mxu0
  %v377 = vadd.f32 0.0, %v376
  %v378 = vpop.f32.mrb[0].mxu0
  %379 = vdwg.mxu0
  %380 = vmatprep.subr.mxu0 0.0
  %381 = vmatpush1.msra.mxu0 %v287
  %382 = vmatprep.subr.mxu0 0.0
  %383 = vmatpush1.msra.mxu0 %v288
  %384 = vmatprep.subr.mxu0 0.0
  %385 = vmatpush1.msra.mxu0 0.0
  %386 = vmatprep.subr.mxu0 0.0
  %387 = vmatpush1.msra.mxu0 0.0
  %388 = vmatprep.subr.mxu0 0.0
  %389 = vmatpush1.msra.mxu0 0.0
  %390 = vmatprep.subr.mxu0 0.0
  %391 = vmatpush1.msra.mxu0 0.0
  %392 = vmatprep.subr.mxu0 0.0
  %393 = vmatpush1.msra.mxu0 0.0
  %394 = vmatprep.subr.mxu0 0.0
  %395 = vmatpush1.msra.mxu0 0.0
  %396 = vmatprep.subr.mxu0 0.0
  %397 = vmatpush1.msra.mxu0 0.0
  %398 = vmatprep.subr.mxu0 0.0
  %399 = vmatpush1.msra.mxu0 0.0
  %400 = vmatprep.subr.mxu0 0.0
  %401 = vmatpush1.msra.mxu0 0.0
  %402 = vmatprep.subr.mxu0 0.0
  %403 = vmatpush1.msra.mxu0 0.0
  %404 = vmatprep.subr.mxu0 0.0
  %405 = vmatpush1.msra.mxu0 0.0
  %406 = vmatprep.subr.mxu0 0.0
  %407 = vmatpush1.msra.mxu0 0.0
  %408 = vmatprep.subr.mxu0 0.0
  %409 = vmatpush1.msra.mxu0 0.0
  %410 = vmatprep.subr.mxu0 0.0
  %411 = vmatpush1.msra.mxu0 0.0
  %412 = vmatprep.subr.mxu0 0.0
  %413 = vmatpush1.msra.mxu0 0.0
  %414 = vmatprep.subr.mxu0 0.0
  %415 = vmatpush1.msra.mxu0 0.0
  %416 = vmatprep.subr.mxu0 0.0
  %417 = vmatpush1.msra.mxu0 0.0
  %418 = vmatprep.subr.mxu0 0.0
  %419 = vmatpush1.msra.mxu0 0.0
  %420 = vmatprep.subr.mxu0 0.0
  %421 = vmatpush1.msra.mxu0 0.0
  %422 = vmatprep.subr.mxu0 0.0
  %423 = vmatpush1.msra.mxu0 0.0
  %424 = vmatprep.subr.mxu0 0.0
  %425 = vmatpush1.msra.mxu0 0.0
  %426 = vmatprep.subr.mxu0 0.0
  %427 = vmatpush1.msra.mxu0 0.0
  %428 = vmatprep.subr.mxu0 0.0
  %429 = vmatpush1.msra.mxu0 0.0
  %430 = vmatprep.subr.mxu0 0.0
  %431 = vmatpush1.msra.mxu0 0.0
  %432 = vmatprep.subr.mxu0 0.0
  %433 = vmatpush1.msra.mxu0 0.0
  %434 = vmatprep.subr.mxu0 0.0
  %435 = vmatpush1.msra.mxu0 0.0
  %436 = vmatprep.subr.mxu0 0.0
  %437 = vmatpush1.msra.mxu0 0.0
  %438 = vmatprep.subr.mxu0 0.0
  %439 = vmatpush1.msra.mxu0 0.0
  %440 = vmatprep.subr.mxu0 0.0
  %441 = vmatpush1.msra.mxu0 0.0
  %442 = vmatprep.subr.mxu0 0.0
  %443 = vmatpush1.msra.mxu0 0.0
  %444 = vmatprep.mubr.f32.mxu0 0.0
  %445 = vmatmul.mubr.f32.gmra.mrb[0].mxu0 %v308
  %v446 = vpop.f32.mrb[0].mxu0
  %v447 = vadd.f32 0.0, %v446
  %v448 = vpop.f32.mrb[0].mxu0
  %449 = vdwg.mxu0
  %v451 = vsel %vm210, %v377, 0
  %453 = vmatprep.subr.mxu0 %v290
  %454 = vmatpush1.msra.mxu0 %v289
  %455 = vmatprep.subr.mxu0 %v292
  %456 = vmatpush1.msra.mxu0 %v291
  %457 = vmatprep.subr.mxu0 %v294
  %458 = vmatpush1.msra.mxu0 %v293
  %459 = vmatprep.subr.mxu0 %v296
  %460 = vmatpush1.msra.mxu0 %v295
  %461 = vmatprep.subr.mxu0 %v298
  %462 = vmatpush1.msra.mxu0 %v297
  %463 = vmatprep.subr.mxu0 %v300
  %464 = vmatpush1.msra.mxu0 %v299
  %465 = vmatprep.subr.mxu0 %v302
  %466 = vmatpush1.msra.mxu0 %v301
  %467 = vmatprep.subr.mxu0 %v304
  %468 = vmatpush1.msra.mxu0 %v303
  %469 = vmatprep.subr.mxu0 0.0
  %470 = vmatpush1.msra.mxu0 0.0
  %471 = vmatprep.subr.mxu0 0.0
  %472 = vmatpush1.msra.mxu0 0.0
  %473 = vmatprep.subr.mxu0 0.0
  %474 = vmatpush1.msra.mxu0 0.0
  %475 = vmatprep.subr.mxu0 0.0
  %476 = vmatpush1.msra.mxu0 0.0
  %477 = vmatprep.subr.mxu0 0.0
  %478 = vmatpush1.msra.mxu0 0.0
  %479 = vmatprep.subr.mxu0 0.0
  %480 = vmatpush1.msra.mxu0 0.0
  %481 = vmatprep.subr.mxu0 0.0
  %482 = vmatpush1.msra.mxu0 0.0
  %483 = vmatprep.subr.mxu0 0.0
  %484 = vmatpush1.msra.mxu0 0.0
  %485 = vmatprep.subr.mxu0 0.0
  %486 = vmatpush1.msra.mxu0 0.0
  %487 = vmatprep.subr.mxu0 0.0
  %488 = vmatpush1.msra.mxu0 0.0
  %489 = vmatprep.subr.mxu0 0.0
  %490 = vmatpush1.msra.mxu0 0.0
  %491 = vmatprep.subr.mxu0 0.0
  %492 = vmatpush1.msra.mxu0 0.0
  %493 = vmatprep.subr.mxu0 0.0
  %494 = vmatpush1.msra.mxu0 0.0
  %495 = vmatprep.subr.mxu0 0.0
  %496 = vmatpush1.msra.mxu0 0.0
  %497 = vmatprep.subr.mxu0 0.0
  %498 = vmatpush1.msra.mxu0 0.0
  %499 = vmatprep.subr.mxu0 0.0
  %500 = vmatpush1.msra.mxu0 0.0
  %501 = vmatprep.subr.mxu0 0.0
  %502 = vmatpush1.msra.mxu0 0.0
  %503 = vmatprep.subr.mxu0 0.0
  %504 = vmatpush1.msra.mxu0 0.0
  %505 = vmatprep.subr.mxu0 0.0
  %506 = vmatpush1.msra.mxu0 0.0
  %507 = vmatprep.subr.mxu0 0.0
  %508 = vmatpush1.msra.mxu0 0.0
  %509 = vmatprep.subr.mxu0 0.0
  %510 = vmatpush1.msra.mxu0 0.0
  %511 = vmatprep.subr.mxu0 0.0
  %512 = vmatpush1.msra.mxu0 0.0
  %513 = vmatprep.subr.mxu0 0.0
  %514 = vmatpush1.msra.mxu0 0.0
  %515 = vmatprep.subr.mxu0 0.0
  %516 = vmatpush1.msra.mxu0 0.0
  %517 = vmatprep.mubr.f32.mxu0 0.0
  %518 = vmatmul.mubr.f32.gmra.mrb[0].mxu0 %v451
  %v519 = vpop.f32.mrb[0].mxu0
  %v520 = vadd.f32 0.0, %v519
  %v521 = vpop.f32.mrb[0].mxu0
  %v522 = vadd.f32 0.0, %v521
  %523 = vdwg.mxu0
  %v525 = vsel %vm210, %v447, 0
  %527 = vmatprep.subr.mxu0 %v290
  %528 = vmatpush1.msra.mxu0 %v289
  %529 = vmatprep.subr.mxu0 %v292
  %530 = vmatpush1.msra.mxu0 %v291
  %531 = vmatprep.subr.mxu0 %v294
  %532 = vmatpush1.msra.mxu0 %v293
  %533 = vmatprep.subr.mxu0 %v296
  %534 = vmatpush1.msra.mxu0 %v295
  %535 = vmatprep.subr.mxu0 %v298
  %536 = vmatpush1.msra.mxu0 %v297
  %537 = vmatprep.subr.mxu0 %v300
  %538 = vmatpush1.msra.mxu0 %v299
  %539 = vmatprep.subr.mxu0 %v302
  %540 = vmatpush1.msra.mxu0 %v301
  %541 = vmatprep.subr.mxu0 %v304
  %542 = vmatpush1.msra.mxu0 %v303
  %543 = vmatprep.subr.mxu0 0.0
  %544 = vmatpush1.msra.mxu0 0.0
  %545 = vmatprep.subr.mxu0 0.0
  %546 = vmatpush1.msra.mxu0 0.0
  %547 = vmatprep.subr.mxu0 0.0
  %548 = vmatpush1.msra.mxu0 0.0
  %549 = vmatprep.subr.mxu0 0.0
  %550 = vmatpush1.msra.mxu0 0.0
  %551 = vmatprep.subr.mxu0 0.0
  %552 = vmatpush1.msra.mxu0 0.0
  %553 = vmatprep.subr.mxu0 0.0
  %554 = vmatpush1.msra.mxu0 0.0
  %555 = vmatprep.subr.mxu0 0.0
  %556 = vmatpush1.msra.mxu0 0.0
  %557 = vmatprep.subr.mxu0 0.0
  %558 = vmatpush1.msra.mxu0 0.0
  %559 = vmatprep.subr.mxu0 0.0
  %560 = vmatpush1.msra.mxu0 0.0
  %561 = vmatprep.subr.mxu0 0.0
  %562 = vmatpush1.msra.mxu0 0.0
  %563 = vmatprep.subr.mxu0 0.0
  %564 = vmatpush1.msra.mxu0 0.0
  %565 = vmatprep.subr.mxu0 0.0
  %566 = vmatpush1.msra.mxu0 0.0
  %567 = vmatprep.subr.mxu0 0.0
  %568 = vmatpush1.msra.mxu0 0.0
  %569 = vmatprep.subr.mxu0 0.0
  %570 = vmatpush1.msra.mxu0 0.0
  %571 = vmatprep.subr.mxu0 0.0
  %572 = vmatpush1.msra.mxu0 0.0
  %573 = vmatprep.subr.mxu0 0.0
  %574 = vmatpush1.msra.mxu0 0.0
  %575 = vmatprep.subr.mxu0 0.0
  %576 = vmatpush1.msra.mxu0 0.0
  %577 = vmatprep.subr.mxu0 0.0
  %578 = vmatpush1.msra.mxu0 0.0
  %579 = vmatprep.subr.mxu0 0.0
  %580 = vmatpush1.msra.mxu0 0.0
  %581 = vmatprep.subr.mxu0 0.0
  %582 = vmatpush1.msra.mxu0 0.0
  %583 = vmatprep.subr.mxu0 0.0
  %584 = vmatpush1.msra.mxu0 0.0
  %585 = vmatprep.subr.mxu0 0.0
  %586 = vmatpush1.msra.mxu0 0.0
  %587 = vmatprep.subr.mxu0 0.0
  %588 = vmatpush1.msra.mxu0 0.0
  %589 = vmatprep.subr.mxu0 0.0
  %590 = vmatpush1.msra.mxu0 0.0
  %591 = vmatprep.mubr.f32.mxu0 0.0
  %592 = vmatmul.mubr.f32.gmra.mrb[0].mxu0 %v525
  %v593 = vpop.f32.mrb[0].mxu0
  %v594 = vadd.f32 0.0, %v593
  %v595 = vpop.f32.mrb[0].mxu0
  %v596 = vadd.f32 0.0, %v595
  %597 = vdwg.mxu0
  %v598 = vld [vmem:[%s6] sm:$0xff]
  %v599 = vld [vmem:[%s7] sm:$0xff]
  %v600 = vmax.f32 %v520, 0.0
  %v601 = vmax.f32 %v522, 0.0
  %v602 = vmax.f32 %v594, 0.0
  %v603 = vmax.f32 %v596, 0.0
  %v604 = vadd.f32 %v600, %v601
  %605 = vadd.xlane.f32.xlu0 %v604
  %v606 = vpop.xlane.xlu0 %605
  %v607 = vadd.f32 %v602, %v603
  %608 = vadd.xlane.f32.xlu0 %v607
  %v609 = vpop.xlane.xlu0 %608
  %v610 = vadd.f32 %v606, %v609
  %v611 = vmul.f32 %v600, %v600
  %v612 = vmul.f32 %v601, %v601
  %v613 = vmul.f32 %v602, %v602
  %v614 = vmul.f32 %v603, %v603
  %v615 = vadd.f32 %v611, %v612
  %616 = vadd.xlane.f32.xlu0 %v615
  %v617 = vpop.xlane.xlu0 %616
  %v618 = vadd.f32 %v613, %v614
  %619 = vadd.xlane.f32.xlu0 %v618
  %v620 = vpop.xlane.xlu0 %619
  %v621 = vadd.f32 %v617, %v620
  %v622 = vmul.f32 %v610, 0.001953125
  %v623 = vmul.f32 %v621, 0.001953125
  %v624 = vmul.f32 %v622, %v622
  %v625 = vsub.f32 %v623, %v624
  %v626 = vadd.f32 %v625, 1e-05
  %v627 = vrsqrt.pop %v626
  %v628 = vmul.f32 %v627, %v598
  %630 = vset.pattern.permute.xlu0 0
  %631 = vperm.xlu0 %630, %v628
  %v632 = vpop.permute.xlu0 %631
  %v634 = vmul.f32 %v600, %v632
  %v635 = vmul.f32 %v601, %v632
  %v636 = vmul.f32 %v602, %v632
  %v637 = vmul.f32 %v603, %v632
  %v638 = vmul.f32 %v622, %v628
  %v639 = vsub.f32 %v599, %v638
  %641 = vset.pattern.permute.xlu0 0
  %642 = vperm.xlu0 %641, %v639
  %v643 = vpop.permute.xlu0 %642
  %v645 = vadd.f32 %v634, %v643
  %v646 = vadd.f32 %v635, %v643
  %v647 = vadd.f32 %v636, %v643
  %v648 = vadd.f32 %v637, %v643
  %v649 = vld [vmem:[%s8] sm:$0xff]
  %v650 = vld [vmem:[%s8 + $0x8] sm:$0xff]
  %v651 = vld [vmem:[%s8 + $0x10] sm:$0xff]
  %v652 = vld [vmem:[%s8 + $0x18] sm:$0xff]
  %v653 = vld [vmem:[%s8 + $0x20] sm:$0xff]
  %v654 = vld [vmem:[%s8 + $0x28] sm:$0xff]
  %v655 = vld [vmem:[%s8 + $0x30] sm:$0xff]
  %v656 = vld [vmem:[%s8 + $0x38] sm:$0xff]
  %v657 = vld [vmem:[%s8 + $0x40] sm:$0xff]
  %v658 = vld [vmem:[%s8 + $0x48] sm:$0xff]
  %v659 = vld [vmem:[%s8 + $0x50] sm:$0xff]
  %v660 = vld [vmem:[%s8 + $0x58] sm:$0xff]
  %v661 = vld [vmem:[%s8 + $0x60] sm:$0xff]
  %v662 = vld [vmem:[%s8 + $0x68] sm:$0xff]
  %v663 = vld [vmem:[%s8 + $0x70] sm:$0xff]
  %v664 = vld [vmem:[%s8 + $0x78] sm:$0xff]
  %v665 = vld [vmem:[%s8 + $0x80] sm:$0xff]
  %v666 = vld [vmem:[%s8 + $0x88] sm:$0xff]
  %v667 = vld [vmem:[%s8 + $0x90] sm:$0xff]
  %v668 = vld [vmem:[%s8 + $0x98] sm:$0xff]
  %v669 = vld [vmem:[%s8 + $0xa0] sm:$0xff]
  %v670 = vld [vmem:[%s8 + $0xa8] sm:$0xff]
  %v671 = vld [vmem:[%s8 + $0xb0] sm:$0xff]
  %v672 = vld [vmem:[%s8 + $0xb8] sm:$0xff]
  %v673 = vld [vmem:[%s8 + $0xc0] sm:$0xff]
  %v674 = vld [vmem:[%s8 + $0xc8] sm:$0xff]
  %v675 = vld [vmem:[%s8 + $0xd0] sm:$0xff]
  %v676 = vld [vmem:[%s8 + $0xd8] sm:$0xff]
  %v677 = vld [vmem:[%s8 + $0xe0] sm:$0xff]
  %v678 = vld [vmem:[%s8 + $0xe8] sm:$0xff]
  %v679 = vld [vmem:[%s8 + $0xf0] sm:$0xff]
  %v680 = vld [vmem:[%s8 + $0xf8] sm:$0xff]
  %v681 = vld [vmem:[%s8 + $0x100] sm:$0xff]
  %v682 = vld [vmem:[%s8 + $0x108] sm:$0xff]
  %v683 = vld [vmem:[%s8 + $0x110] sm:$0xff]
  %v684 = vld [vmem:[%s8 + $0x118] sm:$0xff]
  %v685 = vld [vmem:[%s8 + $0x120] sm:$0xff]
  %v686 = vld [vmem:[%s8 + $0x128] sm:$0xff]
  %v687 = vld [vmem:[%s8 + $0x130] sm:$0xff]
  %v688 = vld [vmem:[%s8 + $0x138] sm:$0xff]
  %v689 = vld [vmem:[%s8 + $0x140] sm:$0xff]
  %v690 = vld [vmem:[%s8 + $0x148] sm:$0xff]
  %v691 = vld [vmem:[%s8 + $0x150] sm:$0xff]
  %v692 = vld [vmem:[%s8 + $0x158] sm:$0xff]
  %v693 = vld [vmem:[%s8 + $0x160] sm:$0xff]
  %v694 = vld [vmem:[%s8 + $0x168] sm:$0xff]
  %v695 = vld [vmem:[%s8 + $0x170] sm:$0xff]
  %v696 = vld [vmem:[%s8 + $0x178] sm:$0xff]
  %v697 = vld [vmem:[%s8 + $0x180] sm:$0xff]
  %v698 = vld [vmem:[%s8 + $0x188] sm:$0xff]
  %v699 = vld [vmem:[%s8 + $0x190] sm:$0xff]
  %v700 = vld [vmem:[%s8 + $0x198] sm:$0xff]
  %v701 = vld [vmem:[%s8 + $0x1a0] sm:$0xff]
  %v702 = vld [vmem:[%s8 + $0x1a8] sm:$0xff]
  %v703 = vld [vmem:[%s8 + $0x1b0] sm:$0xff]
  %v704 = vld [vmem:[%s8 + $0x1b8] sm:$0xff]
  %v705 = vld [vmem:[%s8 + $0x1c0] sm:$0xff]
  %v706 = vld [vmem:[%s8 + $0x1c8] sm:$0xff]
  %v707 = vld [vmem:[%s8 + $0x1d0] sm:$0xff]
  %v708 = vld [vmem:[%s8 + $0x1d8] sm:$0xff]
  %v709 = vld [vmem:[%s8 + $0x1e0] sm:$0xff]
  %v710 = vld [vmem:[%s8 + $0x1e8] sm:$0xff]
  %v711 = vld [vmem:[%s8 + $0x1f0] sm:$0xff]
  %v712 = vld [vmem:[%s8 + $0x1f8] sm:$0xff]
  %v713 = vld [vmem:[%s8 + $0x200] sm:$0xff]
  %v714 = vld [vmem:[%s8 + $0x208] sm:$0xff]
  %v715 = vld [vmem:[%s8 + $0x210] sm:$0xff]
  %v716 = vld [vmem:[%s8 + $0x218] sm:$0xff]
  %v717 = vld [vmem:[%s8 + $0x220] sm:$0xff]
  %v718 = vld [vmem:[%s8 + $0x228] sm:$0xff]
  %v719 = vld [vmem:[%s8 + $0x230] sm:$0xff]
  %v720 = vld [vmem:[%s8 + $0x238] sm:$0xff]
  %v721 = vld [vmem:[%s8 + $0x240] sm:$0xff]
  %v722 = vld [vmem:[%s8 + $0x248] sm:$0xff]
  %v723 = vld [vmem:[%s8 + $0x250] sm:$0xff]
  %v724 = vld [vmem:[%s8 + $0x258] sm:$0xff]
  %v725 = vld [vmem:[%s8 + $0x260] sm:$0xff]
  %v726 = vld [vmem:[%s8 + $0x268] sm:$0xff]
  %v727 = vld [vmem:[%s8 + $0x270] sm:$0xff]
  %v728 = vld [vmem:[%s8 + $0x278] sm:$0xff]
  %v729 = vld [vmem:[%s8 + $0x280] sm:$0xff]
  %v730 = vld [vmem:[%s8 + $0x288] sm:$0xff]
  %v731 = vld [vmem:[%s8 + $0x290] sm:$0xff]
  %v732 = vld [vmem:[%s8 + $0x298] sm:$0xff]
  %v733 = vld [vmem:[%s8 + $0x2a0] sm:$0xff]
  %v734 = vld [vmem:[%s8 + $0x2a8] sm:$0xff]
  %v735 = vld [vmem:[%s8 + $0x2b0] sm:$0xff]
  %v736 = vld [vmem:[%s8 + $0x2b8] sm:$0xff]
  %v737 = vld [vmem:[%s8 + $0x2c0] sm:$0xff]
  %v738 = vld [vmem:[%s8 + $0x2c8] sm:$0xff]
  %v739 = vld [vmem:[%s8 + $0x2d0] sm:$0xff]
  %v740 = vld [vmem:[%s8 + $0x2d8] sm:$0xff]
  %v741 = vld [vmem:[%s8 + $0x2e0] sm:$0xff]
  %v742 = vld [vmem:[%s8 + $0x2e8] sm:$0xff]
  %v743 = vld [vmem:[%s8 + $0x2f0] sm:$0xff]
  %v744 = vld [vmem:[%s8 + $0x2f8] sm:$0xff]
  %v745 = vld [vmem:[%s8 + $0x300] sm:$0xff]
  %v746 = vld [vmem:[%s8 + $0x308] sm:$0xff]
  %v747 = vld [vmem:[%s8 + $0x310] sm:$0xff]
  %v748 = vld [vmem:[%s8 + $0x318] sm:$0xff]
  %v749 = vld [vmem:[%s8 + $0x320] sm:$0xff]
  %v750 = vld [vmem:[%s8 + $0x328] sm:$0xff]
  %v751 = vld [vmem:[%s8 + $0x330] sm:$0xff]
  %v752 = vld [vmem:[%s8 + $0x338] sm:$0xff]
  %v753 = vld [vmem:[%s8 + $0x340] sm:$0xff]
  %v754 = vld [vmem:[%s8 + $0x348] sm:$0xff]
  %v755 = vld [vmem:[%s8 + $0x350] sm:$0xff]
  %v756 = vld [vmem:[%s8 + $0x358] sm:$0xff]
  %v757 = vld [vmem:[%s8 + $0x360] sm:$0xff]
  %v758 = vld [vmem:[%s8 + $0x368] sm:$0xff]
  %v759 = vld [vmem:[%s8 + $0x370] sm:$0xff]
  %v760 = vld [vmem:[%s8 + $0x378] sm:$0xff]
  %v761 = vld [vmem:[%s8 + $0x380] sm:$0xff]
  %v762 = vld [vmem:[%s8 + $0x388] sm:$0xff]
  %v763 = vld [vmem:[%s8 + $0x390] sm:$0xff]
  %v764 = vld [vmem:[%s8 + $0x398] sm:$0xff]
  %v765 = vld [vmem:[%s8 + $0x3a0] sm:$0xff]
  %v766 = vld [vmem:[%s8 + $0x3a8] sm:$0xff]
  %v767 = vld [vmem:[%s8 + $0x3b0] sm:$0xff]
  %v768 = vld [vmem:[%s8 + $0x3b8] sm:$0xff]
  %v769 = vld [vmem:[%s8 + $0x3c0] sm:$0xff]
  %v770 = vld [vmem:[%s8 + $0x3c8] sm:$0xff]
  %v771 = vld [vmem:[%s8 + $0x3d0] sm:$0xff]
  %v772 = vld [vmem:[%s8 + $0x3d8] sm:$0xff]
  %v773 = vld [vmem:[%s8 + $0x3e0] sm:$0xff]
  %v774 = vld [vmem:[%s8 + $0x3e8] sm:$0xff]
  %v775 = vld [vmem:[%s8 + $0x3f0] sm:$0xff]
  %v776 = vld [vmem:[%s8 + $0x3f8] sm:$0xff]
  %v777 = vld [vmem:[%s8 + $0x400] sm:$0xff]
  %v778 = vld [vmem:[%s8 + $0x408] sm:$0xff]
  %v779 = vld [vmem:[%s8 + $0x410] sm:$0xff]
  %v780 = vld [vmem:[%s8 + $0x418] sm:$0xff]
  %v781 = vld [vmem:[%s8 + $0x420] sm:$0xff]
  %v782 = vld [vmem:[%s8 + $0x428] sm:$0xff]
  %v783 = vld [vmem:[%s8 + $0x430] sm:$0xff]
  %v784 = vld [vmem:[%s8 + $0x438] sm:$0xff]
  %v785 = vld [vmem:[%s8 + $0x440] sm:$0xff]
  %v786 = vld [vmem:[%s8 + $0x448] sm:$0xff]
  %v787 = vld [vmem:[%s8 + $0x450] sm:$0xff]
  %v788 = vld [vmem:[%s8 + $0x458] sm:$0xff]
  %v789 = vld [vmem:[%s8 + $0x460] sm:$0xff]
  %v790 = vld [vmem:[%s8 + $0x468] sm:$0xff]
  %v791 = vld [vmem:[%s8 + $0x470] sm:$0xff]
  %v792 = vld [vmem:[%s8 + $0x478] sm:$0xff]
  %v793 = vld [vmem:[%s8 + $0x480] sm:$0xff]
  %v794 = vld [vmem:[%s8 + $0x488] sm:$0xff]
  %v795 = vld [vmem:[%s8 + $0x490] sm:$0xff]
  %v796 = vld [vmem:[%s8 + $0x498] sm:$0xff]
  %v797 = vld [vmem:[%s8 + $0x4a0] sm:$0xff]
  %v798 = vld [vmem:[%s8 + $0x4a8] sm:$0xff]
  %v799 = vld [vmem:[%s8 + $0x4b0] sm:$0xff]
  %v800 = vld [vmem:[%s8 + $0x4b8] sm:$0xff]
  %v801 = vld [vmem:[%s8 + $0x4c0] sm:$0xff]
  %v802 = vld [vmem:[%s8 + $0x4c8] sm:$0xff]
  %v803 = vld [vmem:[%s8 + $0x4d0] sm:$0xff]
  %v804 = vld [vmem:[%s8 + $0x4d8] sm:$0xff]
  %v805 = vld [vmem:[%s8 + $0x4e0] sm:$0xff]
  %v806 = vld [vmem:[%s8 + $0x4e8] sm:$0xff]
  %v807 = vld [vmem:[%s8 + $0x4f0] sm:$0xff]
  %v808 = vld [vmem:[%s8 + $0x4f8] sm:$0xff]
  %v809 = vld [vmem:[%s8 + $0x500] sm:$0xff]
  %v810 = vld [vmem:[%s8 + $0x508] sm:$0xff]
  %v811 = vld [vmem:[%s8 + $0x510] sm:$0xff]
  %v812 = vld [vmem:[%s8 + $0x518] sm:$0xff]
  %v813 = vld [vmem:[%s8 + $0x520] sm:$0xff]
  %v814 = vld [vmem:[%s8 + $0x528] sm:$0xff]
  %v815 = vld [vmem:[%s8 + $0x530] sm:$0xff]
  %v816 = vld [vmem:[%s8 + $0x538] sm:$0xff]
  %v817 = vld [vmem:[%s8 + $0x540] sm:$0xff]
  %v818 = vld [vmem:[%s8 + $0x548] sm:$0xff]
  %v819 = vld [vmem:[%s8 + $0x550] sm:$0xff]
  %v820 = vld [vmem:[%s8 + $0x558] sm:$0xff]
  %v821 = vld [vmem:[%s8 + $0x560] sm:$0xff]
  %v822 = vld [vmem:[%s8 + $0x568] sm:$0xff]
  %v823 = vld [vmem:[%s8 + $0x570] sm:$0xff]
  %v824 = vld [vmem:[%s8 + $0x578] sm:$0xff]
  %v825 = vld [vmem:[%s8 + $0x580] sm:$0xff]
  %v826 = vld [vmem:[%s8 + $0x588] sm:$0xff]
  %v827 = vld [vmem:[%s8 + $0x590] sm:$0xff]
  %v828 = vld [vmem:[%s8 + $0x598] sm:$0xff]
  %v829 = vld [vmem:[%s8 + $0x5a0] sm:$0xff]
  %v830 = vld [vmem:[%s8 + $0x5a8] sm:$0xff]
  %v831 = vld [vmem:[%s8 + $0x5b0] sm:$0xff]
  %v832 = vld [vmem:[%s8 + $0x5b8] sm:$0xff]
  %v833 = vld [vmem:[%s8 + $0x5c0] sm:$0xff]
  %v834 = vld [vmem:[%s8 + $0x5c8] sm:$0xff]
  %v835 = vld [vmem:[%s8 + $0x5d0] sm:$0xff]
  %v836 = vld [vmem:[%s8 + $0x5d8] sm:$0xff]
  %v837 = vld [vmem:[%s8 + $0x5e0] sm:$0xff]
  %v838 = vld [vmem:[%s8 + $0x5e8] sm:$0xff]
  %v839 = vld [vmem:[%s8 + $0x5f0] sm:$0xff]
  %v840 = vld [vmem:[%s8 + $0x5f8] sm:$0xff]
  %v841 = vld [vmem:[%s8 + $0x600] sm:$0xff]
  %v842 = vld [vmem:[%s8 + $0x608] sm:$0xff]
  %v843 = vld [vmem:[%s8 + $0x610] sm:$0xff]
  %v844 = vld [vmem:[%s8 + $0x618] sm:$0xff]
  %v845 = vld [vmem:[%s8 + $0x620] sm:$0xff]
  %v846 = vld [vmem:[%s8 + $0x628] sm:$0xff]
  %v847 = vld [vmem:[%s8 + $0x630] sm:$0xff]
  %v848 = vld [vmem:[%s8 + $0x638] sm:$0xff]
  %v849 = vld [vmem:[%s8 + $0x640] sm:$0xff]
  %v850 = vld [vmem:[%s8 + $0x648] sm:$0xff]
  %v851 = vld [vmem:[%s8 + $0x650] sm:$0xff]
  %v852 = vld [vmem:[%s8 + $0x658] sm:$0xff]
  %v853 = vld [vmem:[%s8 + $0x660] sm:$0xff]
  %v854 = vld [vmem:[%s8 + $0x668] sm:$0xff]
  %v855 = vld [vmem:[%s8 + $0x670] sm:$0xff]
  %v856 = vld [vmem:[%s8 + $0x678] sm:$0xff]
  %v857 = vld [vmem:[%s8 + $0x680] sm:$0xff]
  %v858 = vld [vmem:[%s8 + $0x688] sm:$0xff]
  %v859 = vld [vmem:[%s8 + $0x690] sm:$0xff]
  %v860 = vld [vmem:[%s8 + $0x698] sm:$0xff]
  %v861 = vld [vmem:[%s8 + $0x6a0] sm:$0xff]
  %v862 = vld [vmem:[%s8 + $0x6a8] sm:$0xff]
  %v863 = vld [vmem:[%s8 + $0x6b0] sm:$0xff]
  %v864 = vld [vmem:[%s8 + $0x6b8] sm:$0xff]
  %v865 = vld [vmem:[%s8 + $0x6c0] sm:$0xff]
  %v866 = vld [vmem:[%s8 + $0x6c8] sm:$0xff]
  %v867 = vld [vmem:[%s8 + $0x6d0] sm:$0xff]
  %v868 = vld [vmem:[%s8 + $0x6d8] sm:$0xff]
  %v869 = vld [vmem:[%s8 + $0x6e0] sm:$0xff]
  %v870 = vld [vmem:[%s8 + $0x6e8] sm:$0xff]
  %v871 = vld [vmem:[%s8 + $0x6f0] sm:$0xff]
  %v872 = vld [vmem:[%s8 + $0x6f8] sm:$0xff]
  %v873 = vld [vmem:[%s8 + $0x700] sm:$0xff]
  %v874 = vld [vmem:[%s8 + $0x708] sm:$0xff]
  %v875 = vld [vmem:[%s8 + $0x710] sm:$0xff]
  %v876 = vld [vmem:[%s8 + $0x718] sm:$0xff]
  %v877 = vld [vmem:[%s8 + $0x720] sm:$0xff]
  %v878 = vld [vmem:[%s8 + $0x728] sm:$0xff]
  %v879 = vld [vmem:[%s8 + $0x730] sm:$0xff]
  %v880 = vld [vmem:[%s8 + $0x738] sm:$0xff]
  %v881 = vld [vmem:[%s8 + $0x740] sm:$0xff]
  %v882 = vld [vmem:[%s8 + $0x748] sm:$0xff]
  %v883 = vld [vmem:[%s8 + $0x750] sm:$0xff]
  %v884 = vld [vmem:[%s8 + $0x758] sm:$0xff]
  %v885 = vld [vmem:[%s8 + $0x760] sm:$0xff]
  %v886 = vld [vmem:[%s8 + $0x768] sm:$0xff]
  %v887 = vld [vmem:[%s8 + $0x770] sm:$0xff]
  %v888 = vld [vmem:[%s8 + $0x778] sm:$0xff]
  %v889 = vld [vmem:[%s8 + $0x780] sm:$0xff]
  %v890 = vld [vmem:[%s8 + $0x788] sm:$0xff]
  %v891 = vld [vmem:[%s8 + $0x790] sm:$0xff]
  %v892 = vld [vmem:[%s8 + $0x798] sm:$0xff]
  %v893 = vld [vmem:[%s8 + $0x7a0] sm:$0xff]
  %v894 = vld [vmem:[%s8 + $0x7a8] sm:$0xff]
  %v895 = vld [vmem:[%s8 + $0x7b0] sm:$0xff]
  %v896 = vld [vmem:[%s8 + $0x7b8] sm:$0xff]
  %v897 = vld [vmem:[%s8 + $0x7c0] sm:$0xff]
  %v898 = vld [vmem:[%s8 + $0x7c8] sm:$0xff]
  %v899 = vld [vmem:[%s8 + $0x7d0] sm:$0xff]
  %v900 = vld [vmem:[%s8 + $0x7d8] sm:$0xff]
  %v901 = vld [vmem:[%s8 + $0x7e0] sm:$0xff]
  %v902 = vld [vmem:[%s8 + $0x7e8] sm:$0xff]
  %v903 = vld [vmem:[%s8 + $0x7f0] sm:$0xff]
  %v904 = vld [vmem:[%s8 + $0x7f8] sm:$0xff]
  %v905 = vld [vmem:[%s9] sm:$0xf]
  %vm906 = vcmask 64512
  %v908 = vsel %vm906, %v905, 0
  %910 = vmatprep.subr.mxu0 %v646
  %911 = vmatpush1.msra.mxu0 %v645
  %912 = vmatprep.subr.mxu0 0.0
  %913 = vmatpush1.msra.mxu0 0.0
  %914 = vmatprep.subr.mxu0 0.0
  %915 = vmatpush1.msra.mxu0 0.0
  %916 = vmatprep.subr.mxu0 0.0
  %917 = vmatpush1.msra.mxu0 0.0
  %918 = vmatprep.subr.mxu0 0.0
  %919 = vmatpush1.msra.mxu0 0.0
  %920 = vmatprep.subr.mxu0 0.0
  %921 = vmatpush1.msra.mxu0 0.0
  %922 = vmatprep.subr.mxu0 0.0
  %923 = vmatpush1.msra.mxu0 0.0
  %924 = vmatprep.subr.mxu0 0.0
  %925 = vmatpush1.msra.mxu0 0.0
  %926 = vmatprep.subr.mxu0 0.0
  %927 = vmatpush1.msra.mxu0 0.0
  %928 = vmatprep.subr.mxu0 0.0
  %929 = vmatpush1.msra.mxu0 0.0
  %930 = vmatprep.subr.mxu0 0.0
  %931 = vmatpush1.msra.mxu0 0.0
  %932 = vmatprep.subr.mxu0 0.0
  %933 = vmatpush1.msra.mxu0 0.0
  %934 = vmatprep.subr.mxu0 0.0
  %935 = vmatpush1.msra.mxu0 0.0
  %936 = vmatprep.subr.mxu0 0.0
  %937 = vmatpush1.msra.mxu0 0.0
  %938 = vmatprep.subr.mxu0 0.0
  %939 = vmatpush1.msra.mxu0 0.0
  %940 = vmatprep.subr.mxu0 0.0
  %941 = vmatpush1.msra.mxu0 0.0
  %942 = vmatprep.subr.mxu0 0.0
  %943 = vmatpush1.msra.mxu0 0.0
  %944 = vmatprep.subr.mxu0 0.0
  %945 = vmatpush1.msra.mxu0 0.0
  %946 = vmatprep.subr.mxu0 0.0
  %947 = vmatpush1.msra.mxu0 0.0
  %948 = vmatprep.subr.mxu0 0.0
  %949 = vmatpush1.msra.mxu0 0.0
  %950 = vmatprep.subr.mxu0 0.0
  %951 = vmatpush1.msra.mxu0 0.0
  %952 = vmatprep.subr.mxu0 0.0
  %953 = vmatpush1.msra.mxu0 0.0
  %954 = vmatprep.subr.mxu0 0.0
  %955 = vmatpush1.msra.mxu0 0.0
  %956 = vmatprep.subr.mxu0 0.0
  %957 = vmatpush1.msra.mxu0 0.0
  %958 = vmatprep.subr.mxu0 0.0
  %959 = vmatpush1.msra.mxu0 0.0
  %960 = vmatprep.subr.mxu0 0.0
  %961 = vmatpush1.msra.mxu0 0.0
  %962 = vmatprep.subr.mxu0 0.0
  %963 = vmatpush1.msra.mxu0 0.0
  %964 = vmatprep.subr.mxu0 0.0
  %965 = vmatpush1.msra.mxu0 0.0
  %966 = vmatprep.subr.mxu0 0.0
  %967 = vmatpush1.msra.mxu0 0.0
  %968 = vmatprep.subr.mxu0 0.0
  %969 = vmatpush1.msra.mxu0 0.0
  %970 = vmatprep.subr.mxu0 0.0
  %971 = vmatpush1.msra.mxu0 0.0
  %972 = vmatprep.subr.mxu0 0.0
  %973 = vmatpush1.msra.mxu0 0.0
  %974 = vmatprep.mubr.f32.mxu0 0.0
  %975 = vmatmul.mubr.f32.gmra.mrb[0].mxu0 %v908
  %v976 = vpop.f32.mrb[0].mxu0
  %v977 = vadd.f32 0.0, %v976
  %v978 = vpop.f32.mrb[0].mxu0
  %v979 = vadd.f32 0.0, %v978
  %980 = vdwg.mxu0
  %981 = vmatprep.subr.mxu0 %v648
  %982 = vmatpush1.msra.mxu0 %v647
  %983 = vmatprep.subr.mxu0 0.0
  %984 = vmatpush1.msra.mxu0 0.0
  %985 = vmatprep.subr.mxu0 0.0
  %986 = vmatpush1.msra.mxu0 0.0
  %987 = vmatprep.subr.mxu0 0.0
  %988 = vmatpush1.msra.mxu0 0.0
  %989 = vmatprep.subr.mxu0 0.0
  %990 = vmatpush1.msra.mxu0 0.0
  %991 = vmatprep.subr.mxu0 0.0
  %992 = vmatpush1.msra.mxu0 0.0
  %993 = vmatprep.subr.mxu0 0.0
  %994 = vmatpush1.msra.mxu0 0.0
  %995 = vmatprep.subr.mxu0 0.0
  %996 = vmatpush1.msra.mxu0 0.0
  %997 = vmatprep.subr.mxu0 0.0
  %998 = vmatpush1.msra.mxu0 0.0
  %999 = vmatprep.subr.mxu0 0.0
  %1000 = vmatpush1.msra.mxu0 0.0
  %1001 = vmatprep.subr.mxu0 0.0
  %1002 = vmatpush1.msra.mxu0 0.0
  %1003 = vmatprep.subr.mxu0 0.0
  %1004 = vmatpush1.msra.mxu0 0.0
  %1005 = vmatprep.subr.mxu0 0.0
  %1006 = vmatpush1.msra.mxu0 0.0
  %1007 = vmatprep.subr.mxu0 0.0
  %1008 = vmatpush1.msra.mxu0 0.0
  %1009 = vmatprep.subr.mxu0 0.0
  %1010 = vmatpush1.msra.mxu0 0.0
  %1011 = vmatprep.subr.mxu0 0.0
  %1012 = vmatpush1.msra.mxu0 0.0
  %1013 = vmatprep.subr.mxu0 0.0
  %1014 = vmatpush1.msra.mxu0 0.0
  %1015 = vmatprep.subr.mxu0 0.0
  %1016 = vmatpush1.msra.mxu0 0.0
  %1017 = vmatprep.subr.mxu0 0.0
  %1018 = vmatpush1.msra.mxu0 0.0
  %1019 = vmatprep.subr.mxu0 0.0
  %1020 = vmatpush1.msra.mxu0 0.0
  %1021 = vmatprep.subr.mxu0 0.0
  %1022 = vmatpush1.msra.mxu0 0.0
  %1023 = vmatprep.subr.mxu0 0.0
  %1024 = vmatpush1.msra.mxu0 0.0
  %1025 = vmatprep.subr.mxu0 0.0
  %1026 = vmatpush1.msra.mxu0 0.0
  %1027 = vmatprep.subr.mxu0 0.0
  %1028 = vmatpush1.msra.mxu0 0.0
  %1029 = vmatprep.subr.mxu0 0.0
  %1030 = vmatpush1.msra.mxu0 0.0
  %1031 = vmatprep.subr.mxu0 0.0
  %1032 = vmatpush1.msra.mxu0 0.0
  %1033 = vmatprep.subr.mxu0 0.0
  %1034 = vmatpush1.msra.mxu0 0.0
  %1035 = vmatprep.subr.mxu0 0.0
  %1036 = vmatpush1.msra.mxu0 0.0
  %1037 = vmatprep.subr.mxu0 0.0
  %1038 = vmatpush1.msra.mxu0 0.0
  %1039 = vmatprep.subr.mxu0 0.0
  %1040 = vmatpush1.msra.mxu0 0.0
  %1041 = vmatprep.subr.mxu0 0.0
  %1042 = vmatpush1.msra.mxu0 0.0
  %1043 = vmatprep.subr.mxu0 0.0
  %1044 = vmatpush1.msra.mxu0 0.0
  %1045 = vmatprep.mubr.f32.mxu0 0.0
  %1046 = vmatmul.mubr.f32.gmra.mrb[0].mxu0 %v908
  %v1047 = vpop.f32.mrb[0].mxu0
  %v1048 = vadd.f32 0.0, %v1047
  %v1049 = vpop.f32.mrb[0].mxu0
  %v1050 = vadd.f32 0.0, %v1049
  %1051 = vdwg.mxu0
  %1052 = vmatprep.subr.mxu0 %v650
  %1053 = vmatpush1.msra.mxu0 %v649
  %1054 = vmatprep.subr.mxu0 %v658
  %1055 = vmatpush1.msra.mxu0 %v657
  %1056 = vmatprep.subr.mxu0 %v666
  %1057 = vmatpush1.msra.mxu0 %v665
  %1058 = vmatprep.subr.mxu0 %v674
  %1059 = vmatpush1.msra.mxu0 %v673
  %1060 = vmatprep.subr.mxu0 %v682
  %1061 = vmatpush1.msra.mxu0 %v681
  %1062 = vmatprep.subr.mxu0 %v690
  %1063 = vmatpush1.msra.mxu0 %v689
  %1064 = vmatprep.subr.mxu0 %v698
  %1065 = vmatpush1.msra.mxu0 %v697
  %1066 = vmatprep.subr.mxu0 %v706
  %1067 = vmatpush1.msra.mxu0 %v705
  %1068 = vmatprep.subr.mxu0 %v714
  %1069 = vmatpush1.msra.mxu0 %v713
  %1070 = vmatprep.subr.mxu0 %v722
  %1071 = vmatpush1.msra.mxu0 %v721
  %1072 = vmatprep.subr.mxu0 %v730
  %1073 = vmatpush1.msra.mxu0 %v729
  %1074 = vmatprep.subr.mxu0 %v738
  %1075 = vmatpush1.msra.mxu0 %v737
  %1076 = vmatprep.subr.mxu0 %v746
  %1077 = vmatpush1.msra.mxu0 %v745
  %1078 = vmatprep.subr.mxu0 %v754
  %1079 = vmatpush1.msra.mxu0 %v753
  %1080 = vmatprep.subr.mxu0 %v762
  %1081 = vmatpush1.msra.mxu0 %v761
  %1082 = vmatprep.subr.mxu0 %v770
  %1083 = vmatpush1.msra.mxu0 %v769
  %1084 = vmatprep.subr.mxu0 %v778
  %1085 = vmatpush1.msra.mxu0 %v777
  %1086 = vmatprep.subr.mxu0 %v786
  %1087 = vmatpush1.msra.mxu0 %v785
  %1088 = vmatprep.subr.mxu0 %v794
  %1089 = vmatpush1.msra.mxu0 %v793
  %1090 = vmatprep.subr.mxu0 %v802
  %1091 = vmatpush1.msra.mxu0 %v801
  %1092 = vmatprep.subr.mxu0 %v810
  %1093 = vmatpush1.msra.mxu0 %v809
  %1094 = vmatprep.subr.mxu0 %v818
  %1095 = vmatpush1.msra.mxu0 %v817
  %1096 = vmatprep.subr.mxu0 %v826
  %1097 = vmatpush1.msra.mxu0 %v825
  %1098 = vmatprep.subr.mxu0 %v834
  %1099 = vmatpush1.msra.mxu0 %v833
  %1100 = vmatprep.subr.mxu0 %v842
  %1101 = vmatpush1.msra.mxu0 %v841
  %1102 = vmatprep.subr.mxu0 %v850
  %1103 = vmatpush1.msra.mxu0 %v849
  %1104 = vmatprep.subr.mxu0 %v858
  %1105 = vmatpush1.msra.mxu0 %v857
  %1106 = vmatprep.subr.mxu0 %v866
  %1107 = vmatpush1.msra.mxu0 %v865
  %1108 = vmatprep.subr.mxu0 %v874
  %1109 = vmatpush1.msra.mxu0 %v873
  %1110 = vmatprep.subr.mxu0 %v882
  %1111 = vmatpush1.msra.mxu0 %v881
  %1112 = vmatprep.subr.mxu0 %v890
  %1113 = vmatpush1.msra.mxu0 %v889
  %1114 = vmatprep.subr.mxu0 %v898
  %1115 = vmatpush1.msra.mxu0 %v897
  %1116 = vmatprep.mubr.f32.mxu0 %v979
  %1117 = vmatmul.mubr.f32.gmra.mrb[0].mxu0 %v977
  %v1118 = vpop.f32.mrb[0].mxu0
  %v1119 = vadd.f32 0.0, %v1118
  %v1120 = vpop.f32.mrb[0].mxu0
  %v1121 = vadd.f32 0.0, %v1120
  %1122 = vdwg.mxu0
  %1123 = vmatprep.subr.mxu0 %v652
  %1124 = vmatpush1.msra.mxu0 %v651
  %1125 = vmatprep.subr.mxu0 %v660
  %1126 = vmatpush1.msra.mxu0 %v659
  %1127 = vmatprep.subr.mxu0 %v668
  %1128 = vmatpush1.msra.mxu0 %v667
  %1129 = vmatprep.subr.mxu0 %v676
  %1130 = vmatpush1.msra.mxu0 %v675
  %1131 = vmatprep.subr.mxu0 %v684
  %1132 = vmatpush1.msra.mxu0 %v683
  %1133 = vmatprep.subr.mxu0 %v692
  %1134 = vmatpush1.msra.mxu0 %v691
  %1135 = vmatprep.subr.mxu0 %v700
  %1136 = vmatpush1.msra.mxu0 %v699
  %1137 = vmatprep.subr.mxu0 %v708
  %1138 = vmatpush1.msra.mxu0 %v707
  %1139 = vmatprep.subr.mxu0 %v716
  %1140 = vmatpush1.msra.mxu0 %v715
  %1141 = vmatprep.subr.mxu0 %v724
  %1142 = vmatpush1.msra.mxu0 %v723
  %1143 = vmatprep.subr.mxu0 %v732
  %1144 = vmatpush1.msra.mxu0 %v731
  %1145 = vmatprep.subr.mxu0 %v740
  %1146 = vmatpush1.msra.mxu0 %v739
  %1147 = vmatprep.subr.mxu0 %v748
  %1148 = vmatpush1.msra.mxu0 %v747
  %1149 = vmatprep.subr.mxu0 %v756
  %1150 = vmatpush1.msra.mxu0 %v755
  %1151 = vmatprep.subr.mxu0 %v764
  %1152 = vmatpush1.msra.mxu0 %v763
  %1153 = vmatprep.subr.mxu0 %v772
  %1154 = vmatpush1.msra.mxu0 %v771
  %1155 = vmatprep.subr.mxu0 %v780
  %1156 = vmatpush1.msra.mxu0 %v779
  %1157 = vmatprep.subr.mxu0 %v788
  %1158 = vmatpush1.msra.mxu0 %v787
  %1159 = vmatprep.subr.mxu0 %v796
  %1160 = vmatpush1.msra.mxu0 %v795
  %1161 = vmatprep.subr.mxu0 %v804
  %1162 = vmatpush1.msra.mxu0 %v803
  %1163 = vmatprep.subr.mxu0 %v812
  %1164 = vmatpush1.msra.mxu0 %v811
  %1165 = vmatprep.subr.mxu0 %v820
  %1166 = vmatpush1.msra.mxu0 %v819
  %1167 = vmatprep.subr.mxu0 %v828
  %1168 = vmatpush1.msra.mxu0 %v827
  %1169 = vmatprep.subr.mxu0 %v836
  %1170 = vmatpush1.msra.mxu0 %v835
  %1171 = vmatprep.subr.mxu0 %v844
  %1172 = vmatpush1.msra.mxu0 %v843
  %1173 = vmatprep.subr.mxu0 %v852
  %1174 = vmatpush1.msra.mxu0 %v851
  %1175 = vmatprep.subr.mxu0 %v860
  %1176 = vmatpush1.msra.mxu0 %v859
  %1177 = vmatprep.subr.mxu0 %v868
  %1178 = vmatpush1.msra.mxu0 %v867
  %1179 = vmatprep.subr.mxu0 %v876
  %1180 = vmatpush1.msra.mxu0 %v875
  %1181 = vmatprep.subr.mxu0 %v884
  %1182 = vmatpush1.msra.mxu0 %v883
  %1183 = vmatprep.subr.mxu0 %v892
  %1184 = vmatpush1.msra.mxu0 %v891
  %1185 = vmatprep.subr.mxu0 %v900
  %1186 = vmatpush1.msra.mxu0 %v899
  %1187 = vmatprep.mubr.f32.mxu0 %v979
  %1188 = vmatmul.mubr.f32.gmra.mrb[0].mxu0 %v977
  %v1189 = vpop.f32.mrb[0].mxu0
  %v1190 = vadd.f32 0.0, %v1189
  %v1191 = vpop.f32.mrb[0].mxu0
  %v1192 = vadd.f32 0.0, %v1191
  %1193 = vdwg.mxu0
  %1194 = vmatprep.subr.mxu0 %v654
  %1195 = vmatpush1.msra.mxu0 %v653
  %1196 = vmatprep.subr.mxu0 %v662
  %1197 = vmatpush1.msra.mxu0 %v661
  %1198 = vmatprep.subr.mxu0 %v670
  %1199 = vmatpush1.msra.mxu0 %v669
  %1200 = vmatprep.subr.mxu0 %v678
  %1201 = vmatpush1.msra.mxu0 %v677
  %1202 = vmatprep.subr.mxu0 %v686
  %1203 = vmatpush1.msra.mxu0 %v685
  %1204 = vmatprep.subr.mxu0 %v694
  %1205 = vmatpush1.msra.mxu0 %v693
  %1206 = vmatprep.subr.mxu0 %v702
  %1207 = vmatpush1.msra.mxu0 %v701
  %1208 = vmatprep.subr.mxu0 %v710
  %1209 = vmatpush1.msra.mxu0 %v709
  %1210 = vmatprep.subr.mxu0 %v718
  %1211 = vmatpush1.msra.mxu0 %v717
  %1212 = vmatprep.subr.mxu0 %v726
  %1213 = vmatpush1.msra.mxu0 %v725
  %1214 = vmatprep.subr.mxu0 %v734
  %1215 = vmatpush1.msra.mxu0 %v733
  %1216 = vmatprep.subr.mxu0 %v742
  %1217 = vmatpush1.msra.mxu0 %v741
  %1218 = vmatprep.subr.mxu0 %v750
  %1219 = vmatpush1.msra.mxu0 %v749
  %1220 = vmatprep.subr.mxu0 %v758
  %1221 = vmatpush1.msra.mxu0 %v757
  %1222 = vmatprep.subr.mxu0 %v766
  %1223 = vmatpush1.msra.mxu0 %v765
  %1224 = vmatprep.subr.mxu0 %v774
  %1225 = vmatpush1.msra.mxu0 %v773
  %1226 = vmatprep.subr.mxu0 %v782
  %1227 = vmatpush1.msra.mxu0 %v781
  %1228 = vmatprep.subr.mxu0 %v790
  %1229 = vmatpush1.msra.mxu0 %v789
  %1230 = vmatprep.subr.mxu0 %v798
  %1231 = vmatpush1.msra.mxu0 %v797
  %1232 = vmatprep.subr.mxu0 %v806
  %1233 = vmatpush1.msra.mxu0 %v805
  %1234 = vmatprep.subr.mxu0 %v814
  %1235 = vmatpush1.msra.mxu0 %v813
  %1236 = vmatprep.subr.mxu0 %v822
  %1237 = vmatpush1.msra.mxu0 %v821
  %1238 = vmatprep.subr.mxu0 %v830
  %1239 = vmatpush1.msra.mxu0 %v829
  %1240 = vmatprep.subr.mxu0 %v838
  %1241 = vmatpush1.msra.mxu0 %v837
  %1242 = vmatprep.subr.mxu0 %v846
  %1243 = vmatpush1.msra.mxu0 %v845
  %1244 = vmatprep.subr.mxu0 %v854
  %1245 = vmatpush1.msra.mxu0 %v853
  %1246 = vmatprep.subr.mxu0 %v862
  %1247 = vmatpush1.msra.mxu0 %v861
  %1248 = vmatprep.subr.mxu0 %v870
  %1249 = vmatpush1.msra.mxu0 %v869
  %1250 = vmatprep.subr.mxu0 %v878
  %1251 = vmatpush1.msra.mxu0 %v877
  %1252 = vmatprep.subr.mxu0 %v886
  %1253 = vmatpush1.msra.mxu0 %v885
  %1254 = vmatprep.subr.mxu0 %v894
  %1255 = vmatpush1.msra.mxu0 %v893
  %1256 = vmatprep.subr.mxu0 %v902
  %1257 = vmatpush1.msra.mxu0 %v901
  %1258 = vmatprep.mubr.f32.mxu0 %v979
  %1259 = vmatmul.mubr.f32.gmra.mrb[0].mxu0 %v977
  %v1260 = vpop.f32.mrb[0].mxu0
  %v1261 = vadd.f32 0.0, %v1260
  %v1262 = vpop.f32.mrb[0].mxu0
  %v1263 = vadd.f32 0.0, %v1262
  %1264 = vdwg.mxu0
  %1265 = vmatprep.subr.mxu0 %v656
  %1266 = vmatpush1.msra.mxu0 %v655
  %1267 = vmatprep.subr.mxu0 %v664
  %1268 = vmatpush1.msra.mxu0 %v663
  %1269 = vmatprep.subr.mxu0 %v672
  %1270 = vmatpush1.msra.mxu0 %v671
  %1271 = vmatprep.subr.mxu0 %v680
  %1272 = vmatpush1.msra.mxu0 %v679
  %1273 = vmatprep.subr.mxu0 %v688
  %1274 = vmatpush1.msra.mxu0 %v687
  %1275 = vmatprep.subr.mxu0 %v696
  %1276 = vmatpush1.msra.mxu0 %v695
  %1277 = vmatprep.subr.mxu0 %v704
  %1278 = vmatpush1.msra.mxu0 %v703
  %1279 = vmatprep.subr.mxu0 %v712
  %1280 = vmatpush1.msra.mxu0 %v711
  %1281 = vmatprep.subr.mxu0 %v720
  %1282 = vmatpush1.msra.mxu0 %v719
  %1283 = vmatprep.subr.mxu0 %v728
  %1284 = vmatpush1.msra.mxu0 %v727
  %1285 = vmatprep.subr.mxu0 %v736
  %1286 = vmatpush1.msra.mxu0 %v735
  %1287 = vmatprep.subr.mxu0 %v744
  %1288 = vmatpush1.msra.mxu0 %v743
  %1289 = vmatprep.subr.mxu0 %v752
  %1290 = vmatpush1.msra.mxu0 %v751
  %1291 = vmatprep.subr.mxu0 %v760
  %1292 = vmatpush1.msra.mxu0 %v759
  %1293 = vmatprep.subr.mxu0 %v768
  %1294 = vmatpush1.msra.mxu0 %v767
  %1295 = vmatprep.subr.mxu0 %v776
  %1296 = vmatpush1.msra.mxu0 %v775
  %1297 = vmatprep.subr.mxu0 %v784
  %1298 = vmatpush1.msra.mxu0 %v783
  %1299 = vmatprep.subr.mxu0 %v792
  %1300 = vmatpush1.msra.mxu0 %v791
  %1301 = vmatprep.subr.mxu0 %v800
  %1302 = vmatpush1.msra.mxu0 %v799
  %1303 = vmatprep.subr.mxu0 %v808
  %1304 = vmatpush1.msra.mxu0 %v807
  %1305 = vmatprep.subr.mxu0 %v816
  %1306 = vmatpush1.msra.mxu0 %v815
  %1307 = vmatprep.subr.mxu0 %v824
  %1308 = vmatpush1.msra.mxu0 %v823
  %1309 = vmatprep.subr.mxu0 %v832
  %1310 = vmatpush1.msra.mxu0 %v831
  %1311 = vmatprep.subr.mxu0 %v840
  %1312 = vmatpush1.msra.mxu0 %v839
  %1313 = vmatprep.subr.mxu0 %v848
  %1314 = vmatpush1.msra.mxu0 %v847
  %1315 = vmatprep.subr.mxu0 %v856
  %1316 = vmatpush1.msra.mxu0 %v855
  %1317 = vmatprep.subr.mxu0 %v864
  %1318 = vmatpush1.msra.mxu0 %v863
  %1319 = vmatprep.subr.mxu0 %v872
  %1320 = vmatpush1.msra.mxu0 %v871
  %1321 = vmatprep.subr.mxu0 %v880
  %1322 = vmatpush1.msra.mxu0 %v879
  %1323 = vmatprep.subr.mxu0 %v888
  %1324 = vmatpush1.msra.mxu0 %v887
  %1325 = vmatprep.subr.mxu0 %v896
  %1326 = vmatpush1.msra.mxu0 %v895
  %1327 = vmatprep.subr.mxu0 %v904
  %1328 = vmatpush1.msra.mxu0 %v903
  %1329 = vmatprep.mubr.f32.mxu0 %v979
  %1330 = vmatmul.mubr.f32.gmra.mrb[0].mxu0 %v977
  %v1331 = vpop.f32.mrb[0].mxu0
  %v1332 = vadd.f32 0.0, %v1331
  %v1333 = vpop.f32.mrb[0].mxu0
  %v1334 = vadd.f32 0.0, %v1333
  %1335 = vdwg.mxu0
  %1336 = vmatprep.subr.mxu0 %v650
  %1337 = vmatpush1.msra.mxu0 %v649
  %1338 = vmatprep.subr.mxu0 %v658
  %1339 = vmatpush1.msra.mxu0 %v657
  %1340 = vmatprep.subr.mxu0 %v666
  %1341 = vmatpush1.msra.mxu0 %v665
  %1342 = vmatprep.subr.mxu0 %v674
  %1343 = vmatpush1.msra.mxu0 %v673
  %1344 = vmatprep.subr.mxu0 %v682
  %1345 = vmatpush1.msra.mxu0 %v681
  %1346 = vmatprep.subr.mxu0 %v690
  %1347 = vmatpush1.msra.mxu0 %v689
  %1348 = vmatprep.subr.mxu0 %v698
  %1349 = vmatpush1.msra.mxu0 %v697
  %1350 = vmatprep.subr.mxu0 %v706
  %1351 = vmatpush1.msra.mxu0 %v705
  %1352 = vmatprep.subr.mxu0 %v714
  %1353 = vmatpush1.msra.mxu0 %v713
  %1354 = vmatprep.subr.mxu0 %v722
  %1355 = vmatpush1.msra.mxu0 %v721
  %1356 = vmatprep.subr.mxu0 %v730
  %1357 = vmatpush1.msra.mxu0 %v729
  %1358 = vmatprep.subr.mxu0 %v738
  %1359 = vmatpush1.msra.mxu0 %v737
  %1360 = vmatprep.subr.mxu0 %v746
  %1361 = vmatpush1.msra.mxu0 %v745
  %1362 = vmatprep.subr.mxu0 %v754
  %1363 = vmatpush1.msra.mxu0 %v753
  %1364 = vmatprep.subr.mxu0 %v762
  %1365 = vmatpush1.msra.mxu0 %v761
  %1366 = vmatprep.subr.mxu0 %v770
  %1367 = vmatpush1.msra.mxu0 %v769
  %1368 = vmatprep.subr.mxu0 %v778
  %1369 = vmatpush1.msra.mxu0 %v777
  %1370 = vmatprep.subr.mxu0 %v786
  %1371 = vmatpush1.msra.mxu0 %v785
  %1372 = vmatprep.subr.mxu0 %v794
  %1373 = vmatpush1.msra.mxu0 %v793
  %1374 = vmatprep.subr.mxu0 %v802
  %1375 = vmatpush1.msra.mxu0 %v801
  %1376 = vmatprep.subr.mxu0 %v810
  %1377 = vmatpush1.msra.mxu0 %v809
  %1378 = vmatprep.subr.mxu0 %v818
  %1379 = vmatpush1.msra.mxu0 %v817
  %1380 = vmatprep.subr.mxu0 %v826
  %1381 = vmatpush1.msra.mxu0 %v825
  %1382 = vmatprep.subr.mxu0 %v834
  %1383 = vmatpush1.msra.mxu0 %v833
  %1384 = vmatprep.subr.mxu0 %v842
  %1385 = vmatpush1.msra.mxu0 %v841
  %1386 = vmatprep.subr.mxu0 %v850
  %1387 = vmatpush1.msra.mxu0 %v849
  %1388 = vmatprep.subr.mxu0 %v858
  %1389 = vmatpush1.msra.mxu0 %v857
  %1390 = vmatprep.subr.mxu0 %v866
  %1391 = vmatpush1.msra.mxu0 %v865
  %1392 = vmatprep.subr.mxu0 %v874
  %1393 = vmatpush1.msra.mxu0 %v873
  %1394 = vmatprep.subr.mxu0 %v882
  %1395 = vmatpush1.msra.mxu0 %v881
  %1396 = vmatprep.subr.mxu0 %v890
  %1397 = vmatpush1.msra.mxu0 %v889
  %1398 = vmatprep.subr.mxu0 %v898
  %1399 = vmatpush1.msra.mxu0 %v897
  %1400 = vmatprep.mubr.f32.mxu0 %v1050
  %1401 = vmatmul.mubr.f32.gmra.mrb[0].mxu0 %v1048
  %v1402 = vpop.f32.mrb[0].mxu0
  %v1403 = vadd.f32 0.0, %v1402
  %v1404 = vpop.f32.mrb[0].mxu0
  %v1405 = vadd.f32 0.0, %v1404
  %1406 = vdwg.mxu0
  %1407 = vmatprep.subr.mxu0 %v652
  %1408 = vmatpush1.msra.mxu0 %v651
  %1409 = vmatprep.subr.mxu0 %v660
  %1410 = vmatpush1.msra.mxu0 %v659
  %1411 = vmatprep.subr.mxu0 %v668
  %1412 = vmatpush1.msra.mxu0 %v667
  %1413 = vmatprep.subr.mxu0 %v676
  %1414 = vmatpush1.msra.mxu0 %v675
  %1415 = vmatprep.subr.mxu0 %v684
  %1416 = vmatpush1.msra.mxu0 %v683
  %1417 = vmatprep.subr.mxu0 %v692
  %1418 = vmatpush1.msra.mxu0 %v691
  %1419 = vmatprep.subr.mxu0 %v700
  %1420 = vmatpush1.msra.mxu0 %v699
  %1421 = vmatprep.subr.mxu0 %v708
  %1422 = vmatpush1.msra.mxu0 %v707
  %1423 = vmatprep.subr.mxu0 %v716
  %1424 = vmatpush1.msra.mxu0 %v715
  %1425 = vmatprep.subr.mxu0 %v724
  %1426 = vmatpush1.msra.mxu0 %v723
  %1427 = vmatprep.subr.mxu0 %v732
  %1428 = vmatpush1.msra.mxu0 %v731
  %1429 = vmatprep.subr.mxu0 %v740
  %1430 = vmatpush1.msra.mxu0 %v739
  %1431 = vmatprep.subr.mxu0 %v748
  %1432 = vmatpush1.msra.mxu0 %v747
  %1433 = vmatprep.subr.mxu0 %v756
  %1434 = vmatpush1.msra.mxu0 %v755
  %1435 = vmatprep.subr.mxu0 %v764
  %1436 = vmatpush1.msra.mxu0 %v763
  %1437 = vmatprep.subr.mxu0 %v772
  %1438 = vmatpush1.msra.mxu0 %v771
  %1439 = vmatprep.subr.mxu0 %v780
  %1440 = vmatpush1.msra.mxu0 %v779
  %1441 = vmatprep.subr.mxu0 %v788
  %1442 = vmatpush1.msra.mxu0 %v787
  %1443 = vmatprep.subr.mxu0 %v796
  %1444 = vmatpush1.msra.mxu0 %v795
  %1445 = vmatprep.subr.mxu0 %v804
  %1446 = vmatpush1.msra.mxu0 %v803
  %1447 = vmatprep.subr.mxu0 %v812
  %1448 = vmatpush1.msra.mxu0 %v811
  %1449 = vmatprep.subr.mxu0 %v820
  %1450 = vmatpush1.msra.mxu0 %v819
  %1451 = vmatprep.subr.mxu0 %v828
  %1452 = vmatpush1.msra.mxu0 %v827
  %1453 = vmatprep.subr.mxu0 %v836
  %1454 = vmatpush1.msra.mxu0 %v835
  %1455 = vmatprep.subr.mxu0 %v844
  %1456 = vmatpush1.msra.mxu0 %v843
  %1457 = vmatprep.subr.mxu0 %v852
  %1458 = vmatpush1.msra.mxu0 %v851
  %1459 = vmatprep.subr.mxu0 %v860
  %1460 = vmatpush1.msra.mxu0 %v859
  %1461 = vmatprep.subr.mxu0 %v868
  %1462 = vmatpush1.msra.mxu0 %v867
  %1463 = vmatprep.subr.mxu0 %v876
  %1464 = vmatpush1.msra.mxu0 %v875
  %1465 = vmatprep.subr.mxu0 %v884
  %1466 = vmatpush1.msra.mxu0 %v883
  %1467 = vmatprep.subr.mxu0 %v892
  %1468 = vmatpush1.msra.mxu0 %v891
  %1469 = vmatprep.subr.mxu0 %v900
  %1470 = vmatpush1.msra.mxu0 %v899
  %1471 = vmatprep.mubr.f32.mxu0 %v1050
  %1472 = vmatmul.mubr.f32.gmra.mrb[0].mxu0 %v1048
  %v1473 = vpop.f32.mrb[0].mxu0
  %v1474 = vadd.f32 0.0, %v1473
  %v1475 = vpop.f32.mrb[0].mxu0
  %v1476 = vadd.f32 0.0, %v1475
  %1477 = vdwg.mxu0
  %1478 = vmatprep.subr.mxu0 %v654
  %1479 = vmatpush1.msra.mxu0 %v653
  %1480 = vmatprep.subr.mxu0 %v662
  %1481 = vmatpush1.msra.mxu0 %v661
  %1482 = vmatprep.subr.mxu0 %v670
  %1483 = vmatpush1.msra.mxu0 %v669
  %1484 = vmatprep.subr.mxu0 %v678
  %1485 = vmatpush1.msra.mxu0 %v677
  %1486 = vmatprep.subr.mxu0 %v686
  %1487 = vmatpush1.msra.mxu0 %v685
  %1488 = vmatprep.subr.mxu0 %v694
  %1489 = vmatpush1.msra.mxu0 %v693
  %1490 = vmatprep.subr.mxu0 %v702
  %1491 = vmatpush1.msra.mxu0 %v701
  %1492 = vmatprep.subr.mxu0 %v710
  %1493 = vmatpush1.msra.mxu0 %v709
  %1494 = vmatprep.subr.mxu0 %v718
  %1495 = vmatpush1.msra.mxu0 %v717
  %1496 = vmatprep.subr.mxu0 %v726
  %1497 = vmatpush1.msra.mxu0 %v725
  %1498 = vmatprep.subr.mxu0 %v734
  %1499 = vmatpush1.msra.mxu0 %v733
  %1500 = vmatprep.subr.mxu0 %v742
  %1501 = vmatpush1.msra.mxu0 %v741
  %1502 = vmatprep.subr.mxu0 %v750
  %1503 = vmatpush1.msra.mxu0 %v749
  %1504 = vmatprep.subr.mxu0 %v758
  %1505 = vmatpush1.msra.mxu0 %v757
  %1506 = vmatprep.subr.mxu0 %v766
  %1507 = vmatpush1.msra.mxu0 %v765
  %1508 = vmatprep.subr.mxu0 %v774
  %1509 = vmatpush1.msra.mxu0 %v773
  %1510 = vmatprep.subr.mxu0 %v782
  %1511 = vmatpush1.msra.mxu0 %v781
  %1512 = vmatprep.subr.mxu0 %v790
  %1513 = vmatpush1.msra.mxu0 %v789
  %1514 = vmatprep.subr.mxu0 %v798
  %1515 = vmatpush1.msra.mxu0 %v797
  %1516 = vmatprep.subr.mxu0 %v806
  %1517 = vmatpush1.msra.mxu0 %v805
  %1518 = vmatprep.subr.mxu0 %v814
  %1519 = vmatpush1.msra.mxu0 %v813
  %1520 = vmatprep.subr.mxu0 %v822
  %1521 = vmatpush1.msra.mxu0 %v821
  %1522 = vmatprep.subr.mxu0 %v830
  %1523 = vmatpush1.msra.mxu0 %v829
  %1524 = vmatprep.subr.mxu0 %v838
  %1525 = vmatpush1.msra.mxu0 %v837
  %1526 = vmatprep.subr.mxu0 %v846
  %1527 = vmatpush1.msra.mxu0 %v845
  %1528 = vmatprep.subr.mxu0 %v854
  %1529 = vmatpush1.msra.mxu0 %v853
  %1530 = vmatprep.subr.mxu0 %v862
  %1531 = vmatpush1.msra.mxu0 %v861
  %1532 = vmatprep.subr.mxu0 %v870
  %1533 = vmatpush1.msra.mxu0 %v869
  %1534 = vmatprep.subr.mxu0 %v878
  %1535 = vmatpush1.msra.mxu0 %v877
  %1536 = vmatprep.subr.mxu0 %v886
  %1537 = vmatpush1.msra.mxu0 %v885
  %1538 = vmatprep.subr.mxu0 %v894
  %1539 = vmatpush1.msra.mxu0 %v893
  %1540 = vmatprep.subr.mxu0 %v902
  %1541 = vmatpush1.msra.mxu0 %v901
  %1542 = vmatprep.mubr.f32.mxu0 %v1050
  %1543 = vmatmul.mubr.f32.gmra.mrb[0].mxu0 %v1048
  %v1544 = vpop.f32.mrb[0].mxu0
  %v1545 = vadd.f32 0.0, %v1544
  %v1546 = vpop.f32.mrb[0].mxu0
  %v1547 = vadd.f32 0.0, %v1546
  %1548 = vdwg.mxu0
  %1549 = vmatprep.subr.mxu0 %v656
  %1550 = vmatpush1.msra.mxu0 %v655
  %1551 = vmatprep.subr.mxu0 %v664
  %1552 = vmatpush1.msra.mxu0 %v663
  %1553 = vmatprep.subr.mxu0 %v672
  %1554 = vmatpush1.msra.mxu0 %v671
  %1555 = vmatprep.subr.mxu0 %v680
  %1556 = vmatpush1.msra.mxu0 %v679
  %1557 = vmatprep.subr.mxu0 %v688
  %1558 = vmatpush1.msra.mxu0 %v687
  %1559 = vmatprep.subr.mxu0 %v696
  %1560 = vmatpush1.msra.mxu0 %v695
  %1561 = vmatprep.subr.mxu0 %v704
  %1562 = vmatpush1.msra.mxu0 %v703
  %1563 = vmatprep.subr.mxu0 %v712
  %1564 = vmatpush1.msra.mxu0 %v711
  %1565 = vmatprep.subr.mxu0 %v720
  %1566 = vmatpush1.msra.mxu0 %v719
  %1567 = vmatprep.subr.mxu0 %v728
  %1568 = vmatpush1.msra.mxu0 %v727
  %1569 = vmatprep.subr.mxu0 %v736
  %1570 = vmatpush1.msra.mxu0 %v735
  %1571 = vmatprep.subr.mxu0 %v744
  %1572 = vmatpush1.msra.mxu0 %v743
  %1573 = vmatprep.subr.mxu0 %v752
  %1574 = vmatpush1.msra.mxu0 %v751
  %1575 = vmatprep.subr.mxu0 %v760
  %1576 = vmatpush1.msra.mxu0 %v759
  %1577 = vmatprep.subr.mxu0 %v768
  %1578 = vmatpush1.msra.mxu0 %v767
  %1579 = vmatprep.subr.mxu0 %v776
  %1580 = vmatpush1.msra.mxu0 %v775
  %1581 = vmatprep.subr.mxu0 %v784
  %1582 = vmatpush1.msra.mxu0 %v783
  %1583 = vmatprep.subr.mxu0 %v792
  %1584 = vmatpush1.msra.mxu0 %v791
  %1585 = vmatprep.subr.mxu0 %v800
  %1586 = vmatpush1.msra.mxu0 %v799
  %1587 = vmatprep.subr.mxu0 %v808
  %1588 = vmatpush1.msra.mxu0 %v807
  %1589 = vmatprep.subr.mxu0 %v816
  %1590 = vmatpush1.msra.mxu0 %v815
  %1591 = vmatprep.subr.mxu0 %v824
  %1592 = vmatpush1.msra.mxu0 %v823
  %1593 = vmatprep.subr.mxu0 %v832
  %1594 = vmatpush1.msra.mxu0 %v831
  %1595 = vmatprep.subr.mxu0 %v840
  %1596 = vmatpush1.msra.mxu0 %v839
  %1597 = vmatprep.subr.mxu0 %v848
  %1598 = vmatpush1.msra.mxu0 %v847
  %1599 = vmatprep.subr.mxu0 %v856
  %1600 = vmatpush1.msra.mxu0 %v855
  %1601 = vmatprep.subr.mxu0 %v864
  %1602 = vmatpush1.msra.mxu0 %v863
  %1603 = vmatprep.subr.mxu0 %v872
  %1604 = vmatpush1.msra.mxu0 %v871
  %1605 = vmatprep.subr.mxu0 %v880
  %1606 = vmatpush1.msra.mxu0 %v879
  %1607 = vmatprep.subr.mxu0 %v888
  %1608 = vmatpush1.msra.mxu0 %v887
  %1609 = vmatprep.subr.mxu0 %v896
  %1610 = vmatpush1.msra.mxu0 %v895
  %1611 = vmatprep.subr.mxu0 %v904
  %1612 = vmatpush1.msra.mxu0 %v903
  %1613 = vmatprep.mubr.f32.mxu0 %v1050
  %1614 = vmatmul.mubr.f32.gmra.mrb[0].mxu0 %v1048
  %v1615 = vpop.f32.mrb[0].mxu0
  %v1616 = vadd.f32 0.0, %v1615
  %v1617 = vpop.f32.mrb[0].mxu0
  %v1618 = vadd.f32 0.0, %v1617
  %1619 = vdwg.mxu0
  %v1620 = vmul.f32 %v1119, 0.5
  %v1621 = vmul.f32 %v1121, 0.5
  %v1622 = vmul.f32 %v1190, 0.5
  %v1623 = vmul.f32 %v1192, 0.5
  %v1624 = vmul.f32 %v1261, 0.5
  %v1625 = vmul.f32 %v1263, 0.5
  %v1626 = vmul.f32 %v1332, 0.5
  %v1627 = vmul.f32 %v1334, 0.5
  %v1628 = vmul.f32 %v1403, 0.5
  %v1629 = vmul.f32 %v1405, 0.5
  %v1630 = vmul.f32 %v1474, 0.5
  %v1631 = vmul.f32 %v1476, 0.5
  %v1632 = vmul.f32 %v1545, 0.5
  %v1633 = vmul.f32 %v1547, 0.5
  %v1634 = vmul.f32 %v1616, 0.5
  %v1635 = vmul.f32 %v1618, 0.5
  %v1636 = vtanh.pop %v1620
  %v1637 = vtanh.pop %v1621
  %v1638 = vtanh.pop %v1622
  %v1639 = vtanh.pop %v1623
  %v1640 = vtanh.pop %v1624
  %v1641 = vtanh.pop %v1625
  %v1642 = vtanh.pop %v1626
  %v1643 = vtanh.pop %v1627
  %v1644 = vtanh.pop %v1628
  %v1645 = vtanh.pop %v1629
  %v1646 = vtanh.pop %v1630
  %v1647 = vtanh.pop %v1631
  %v1648 = vtanh.pop %v1632
  %v1649 = vtanh.pop %v1633
  %v1650 = vtanh.pop %v1634
  %v1651 = vtanh.pop %v1635
  %v1652 = vmul.f32 %v1636, 0.5
  %v1653 = vmul.f32 %v1637, 0.5
  %v1654 = vmul.f32 %v1638, 0.5
  %v1655 = vmul.f32 %v1639, 0.5
  %v1656 = vmul.f32 %v1640, 0.5
  %v1657 = vmul.f32 %v1641, 0.5
  %v1658 = vmul.f32 %v1642, 0.5
  %v1659 = vmul.f32 %v1643, 0.5
  %v1660 = vmul.f32 %v1644, 0.5
  %v1661 = vmul.f32 %v1645, 0.5
  %v1662 = vmul.f32 %v1646, 0.5
  %v1663 = vmul.f32 %v1647, 0.5
  %v1664 = vmul.f32 %v1648, 0.5
  %v1665 = vmul.f32 %v1649, 0.5
  %v1666 = vmul.f32 %v1650, 0.5
  %v1667 = vmul.f32 %v1651, 0.5
  %v1668 = vadd.f32 %v1652, 0.5
  %v1669 = vadd.f32 %v1653, 0.5
  %v1670 = vadd.f32 %v1654, 0.5
  %v1671 = vadd.f32 %v1655, 0.5
  %v1672 = vadd.f32 %v1656, 0.5
  %v1673 = vadd.f32 %v1657, 0.5
  %v1674 = vadd.f32 %v1658, 0.5
  %v1675 = vadd.f32 %v1659, 0.5
  %v1676 = vadd.f32 %v1660, 0.5
  %v1677 = vadd.f32 %v1661, 0.5
  %v1678 = vadd.f32 %v1662, 0.5
  %v1679 = vadd.f32 %v1663, 0.5
  %v1680 = vadd.f32 %v1664, 0.5
  %v1681 = vadd.f32 %v1665, 0.5
  %v1682 = vadd.f32 %v1666, 0.5
  %v1683 = vadd.f32 %v1667, 0.5
  %v1700 = vcombine.low %v1668, %v1669
  %v1701 = vcombine.low %v1670, %v1671
  %v1702 = vcombine.low %v1672, %v1673
  %v1703 = vcombine.low %v1674, %v1675
  %v1704 = vcombine.low %v1676, %v1677
  %v1705 = vcombine.low %v1678, %v1679
  %v1706 = vcombine.low %v1680, %v1681
  %v1707 = vcombine.low %v1682, %v1683
  %1716 = vst [vmem:[%s10] sm:$0xff] %v1700
  %1717 = vst [vmem:[%s10 + $0x8] sm:$0xff] %v1701
  %1718 = vst [vmem:[%s10 + $0x10] sm:$0xff] %v1702
  %1719 = vst [vmem:[%s10 + $0x18] sm:$0xff] %v1703
  %1720 = vst [vmem:[%s10 + $0x20] sm:$0xff] %v1704
  %1721 = vst [vmem:[%s10 + $0x28] sm:$0xff] %v1705
  %1722 = vst [vmem:[%s10 + $0x30] sm:$0xff] %v1706
  %1723 = vst [vmem:[%s10 + $0x38] sm:$0xff] %v1707
  // Predicated region
  $region42: #{autoencodernet_forward.1} parent=0 // pred_check
    _
  $region43: #{autoencodernet_forward.1} parent=0 // pred_check_branch
    %1725 = sbr.rel (0) target = $region45
  $region44: #{autoencodernet_forward.1} parent=0 // pred_region
    _
  $region45: #{autoencodernet_forward.1} parent=0 // pred_fallthru
    _
  // Predicated region
  $region46: #{autoencodernet_forward.1} parent=0 // pred_check
    _
  $region47: #{autoencodernet_forward.1} parent=0 // pred_check_branch
    %1727 = sbr.rel (0) target = $region49
  $region48: #{autoencodernet_forward.1} parent=0 // pred_region
    _
  $region49: #{autoencodernet_forward.1} parent=0 // pred_fallthru
    _

</llo_original>
